<compile_context>
chip_gen: v6e
topology: v6e:2x2x1
jax: 0.10.0
libtpu: 0.0.40
codegen_flags: <defaults>
</compile_context>

<pallas_src>
import jax
import jax.numpy as jnp
from jax.experimental import pallas as pl
from jax.experimental.pallas import tpu as pltpu

EMB_DIM = 32     # args.emb_dim
LSTM_SIZE = 32   # args.lstm_size
VOCAB = 64
SEQ_LEN = 8
DROPOUT_P = 0.8


def _lang_model_kernel(inputs_ref,    # VMEM [S, V]   one-hot tokens
                       emb_ref,       # VMEM [V, E]   embedding matrix
                       w_ih_t_ref,    # VMEM [E, 4H]  lstm weight_ih.T
                       w_hh_t_ref,    # VMEM [H, 4H]  lstm weight_hh.T
                       b_ih_ref,      # VMEM [1, 4H]
                       b_hh_ref,      # VMEM [1, 4H]
                       w_gen_t_ref,   # VMEM [H, Vp]  linear_lang_gen.weight.T (lane-padded)
                       b_gen_ref,     # VMEM [1, Vp]
                       mask_ref,      # VMEM [S, H]   pre-scaled dropout mask (0 or 1/(1-p))
                       out_ref):      # VMEM [S, Vp]
    S = inputs_ref.shape[0]
    H = w_hh_t_ref.shape[0]

    # Embedding lookup via matmul on the one-hot inputs: x_emb = inputs @ emb_mat
    x_emb = jnp.dot(inputs_ref[...], emb_ref[...],
                    preferred_element_type=jnp.float32)               # [S, E]

    # Hoist all parameter loads out of the recurrence.
    w_ih_t = w_ih_t_ref[...]
    w_hh_t = w_hh_t_ref[...]
    b_gates = b_ih_ref[...] + b_hh_ref[...]                           # [1, 4H]
    mask = mask_ref[...]                                              # [S, H]

    # hx_enc = cx_enc = zeros(1, LSTM_SIZE); carried as values (stay in vregs).
    hx = jnp.zeros((1, H), jnp.float32)
    cx = jnp.zeros((1, H), jnp.float32)

    h_rows = []
    for i in range(S):                 # static unroll: S is a compile-time constant
        x_t = x_emb[i:i + 1, :]                                       # [1, E]

        # gates = x W_ih^T + h W_hh^T + b_ih + b_hh -> [1, 4H], order (i, f, g, o)
        gates = (jnp.dot(x_t, w_ih_t, preferred_element_type=jnp.float32)
                 + jnp.dot(hx, w_hh_t, preferred_element_type=jnp.float32)
                 + b_gates)

        # One sigmoid + one tanh pass over the full [1, 4H] vector, then slice.
        sig = jax.nn.sigmoid(gates)
        tnh = jnp.tanh(gates)
        i_g = sig[:, 0 * H:1 * H]
        f_g = sig[:, 1 * H:2 * H]
        g_g = tnh[:, 2 * H:3 * H]
        o_g = sig[:, 3 * H:4 * H]

        cx = f_g * cx + i_g * g_g
        # Dropout is applied to hx itself (hx_enc = dropout(hx_enc) in PyTorch),
        # so the dropped state feeds both the projection and the next LSTM step.
        hx = o_g * jnp.tanh(cx) * mask[i:i + 1, :]
        h_rows.append(hx)

    # Batched output projection: one [S,H] @ [H,Vp] matmul + one lane-dense store.
    h_all = jnp.concatenate(h_rows, axis=0)                           # [S, H]
    out_ref[...] = (jnp.dot(h_all, w_gen_t_ref[...],
                            preferred_element_type=jnp.float32)
                    + b_gen_ref[...])


def lang_model_forward(inputs, params, dropout_key):
    """inputs: one-hot [S, V] float32. Returns logits [S, V] (stack of the
    per-step [1, V] logits the PyTorch module returns as a list)."""
    S, V = inputs.shape
    H = params["w_hh"].shape[1]
    Vp = pl.cdiv(V, 128) * 128            # lane-pad vocab so the output store is dense

    w_ih_t = params["w_ih"].T                                   # [E, 4H]
    w_hh_t = params["w_hh"].T                                   # [H, 4H]
    b_ih = params["b_ih"].reshape(1, 4 * H)
    b_hh = params["b_hh"].reshape(1, 4 * H)
    w_gen_t = jnp.pad(params["w_gen"].T, ((0, 0), (0, Vp - V)))  # [H, Vp]
    b_gen = jnp.pad(params["b_gen"].reshape(1, V), ((0, 0), (0, Vp - V)))

    # nn.Dropout(p=0.8) in training mode: keep w.p. 0.2, scale survivors by 5.
    # Randomness drawn with jax.random in the wrapper (no in-kernel stateful PRNG).
    keep = jax.random.bernoulli(dropout_key, 1.0 - DROPOUT_P, (S, H))
    mask = keep.astype(jnp.float32) * jnp.float32(1.0 / (1.0 - DROPOUT_P))

    vmem = pl.BlockSpec(memory_space=pltpu.MemorySpace.VMEM)

    out = pl.pallas_call(
        _lang_model_kernel,
        out_shape=jax.ShapeDtypeStruct((S, Vp), jnp.float32),
        in_specs=[vmem] * 9,
        out_specs=vmem,
    )(inputs, params["emb_mat"], w_ih_t, w_hh_t, b_ih, b_hh, w_gen_t, b_gen, mask)

    return out[:, :V]


def init_params(key, vocab, emb_dim, hidden):
    """Deterministic synthetic initialization (shapes match nn.LSTMCell /
    nn.Linear / emb_mat in __init__). Both LSTM biases are zeroed, exactly as
    in the module's __init__."""
    ks = jax.random.split(key, 4)
    scale = 0.1
    return {
        "emb_mat": scale * jax.random.normal(ks[0], (vocab, emb_dim), jnp.float32),
        "w_ih":    scale * jax.random.normal(ks[1], (4 * hidden, emb_dim), jnp.float32),
        "w_hh":    scale * jax.random.normal(ks[2], (4 * hidden, hidden), jnp.float32),
        "b_ih":    jnp.zeros((4 * hidden,), jnp.float32),   # .fill_(0)
        "b_hh":    jnp.zeros((4 * hidden,), jnp.float32),   # .fill_(0)
        "w_gen":   scale * jax.random.normal(ks[3], (vocab, hidden), jnp.float32),
        "b_gen":   jnp.zeros((vocab,), jnp.float32),
    }


if __name__ == "__main__":
    key = jax.random.PRNGKey(0)
    k_param, k_ids, k_drop = jax.random.split(key, 3)

    params = init_params(k_param, VOCAB, EMB_DIM, LSTM_SIZE)

    # One-hot input sequence [SeqLength, VocabSize], as the forward expects.
    token_ids = jax.random.randint(k_ids, (SEQ_LEN,), 0, VOCAB)
    inputs = jax.nn.one_hot(token_ids, VOCAB, dtype=jnp.float32)

    logits = lang_model_forward(inputs, params, k_drop)
    logits = jax.block_until_ready(logits)

    assert logits.shape == (SEQ_LEN, VOCAB)
    assert bool(jnp.all(jnp.isfinite(logits)))
    print("KERNEL_OK")
</pallas_src>

<mosaic_0001>
module attributes {stable_mosaic.version = 11 : i64} {
  func.func @_lang_model_kernel(%arg0: memref<8x64xf32, #tpu.memory_space<vmem>>, %arg1: memref<64x32xf32, #tpu.memory_space<vmem>>, %arg2: memref<32x128xf32, #tpu.memory_space<vmem>>, %arg3: memref<32x128xf32, #tpu.memory_space<vmem>>, %arg4: memref<1x128xf32, #tpu.memory_space<vmem>>, %arg5: memref<1x128xf32, #tpu.memory_space<vmem>>, %arg6: memref<32x128xf32, #tpu.memory_space<vmem>>, %arg7: memref<1x128xf32, #tpu.memory_space<vmem>>, %arg8: memref<8x32xf32, #tpu.memory_space<vmem>>, %arg9: memref<8x128xf32, #tpu.memory_space<vmem>>) attributes {dimension_semantics = [], scalar_prefetch = 0 : i64, scratch_operands = 0 : i64, tpu.core_type = #tpu.core_type<tc>} {
    %c0 = arith.constant 0 : index
    %c0_0 = arith.constant 0 : index
    %0 = vector.load %arg0[%c0, %c0_0] : memref<8x64xf32, #tpu.memory_space<vmem>>, vector<8x64xf32>
    %c0_1 = arith.constant 0 : index
    %c0_2 = arith.constant 0 : index
    %1 = vector.load %arg1[%c0_1, %c0_2] : memref<64x32xf32, #tpu.memory_space<vmem>>, vector<64x32xf32>
    %cst = arith.constant dense<0.000000e+00> : vector<8x32xf32>
    %2 = tpu.matmul %0, %1, %cst {dimension_numbers = #tpu.dot_dimension_numbers<[1], [0], [0], [1], [0, 0, 1, 1], [], []>} : vector<8x64xf32>, vector<64x32xf32>, vector<8x32xf32> -> vector<8x32xf32>
    %c0_3 = arith.constant 0 : index
    %c0_4 = arith.constant 0 : index
    %3 = vector.load %arg2[%c0_3, %c0_4] : memref<32x128xf32, #tpu.memory_space<vmem>>, vector<32x128xf32>
    %c0_5 = arith.constant 0 : index
    %c0_6 = arith.constant 0 : index
    %4 = vector.load %arg3[%c0_5, %c0_6] : memref<32x128xf32, #tpu.memory_space<vmem>>, vector<32x128xf32>
    %c0_7 = arith.constant 0 : index
    %c0_8 = arith.constant 0 : index
    %5 = vector.load %arg4[%c0_7, %c0_8] : memref<1x128xf32, #tpu.memory_space<vmem>>, vector<1x128xf32>
    %c0_9 = arith.constant 0 : index
    %c0_10 = arith.constant 0 : index
    %6 = vector.load %arg5[%c0_9, %c0_10] : memref<1x128xf32, #tpu.memory_space<vmem>>, vector<1x128xf32>
    %7 = arith.addf %5, %6 : vector<1x128xf32>
    %c0_11 = arith.constant 0 : index
    %c0_12 = arith.constant 0 : index
    %8 = vector.load %arg8[%c0_11, %c0_12] : memref<8x32xf32, #tpu.memory_space<vmem>>, vector<8x32xf32>
    %cst_13 = arith.constant 0.000000e+00 : f32
    %9 = vector.broadcast %cst_13 : f32 to vector<1x32xf32>
    %cst_14 = arith.constant 0.000000e+00 : f32
    %10 = vector.broadcast %cst_14 : f32 to vector<1x32xf32>
    %11 = vector.extract_strided_slice %2 {offsets = [0, 0], sizes = [1, 32], strides = [1, 1]} : vector<8x32xf32> to vector<1x32xf32>
    %cst_15 = arith.constant dense<0.000000e+00> : vector<1x128xf32>
    %12 = tpu.matmul %11, %3, %cst_15 {dimension_numbers = #tpu.dot_dimension_numbers<[1], [0], [0], [1], [0, 0, 1, 1], [], []>} : vector<1x32xf32>, vector<32x128xf32>, vector<1x128xf32> -> vector<1x128xf32>
    %cst_16 = arith.constant dense<0.000000e+00> : vector<1x128xf32>
    %13 = tpu.matmul %9, %4, %cst_16 {dimension_numbers = #tpu.dot_dimension_numbers<[1], [0], [0], [1], [0, 0, 1, 1], [], []>} : vector<1x32xf32>, vector<32x128xf32>, vector<1x128xf32> -> vector<1x128xf32>
    %14 = arith.addf %12, %13 : vector<1x128xf32>
    %15 = arith.addf %14, %7 : vector<1x128xf32>
    %16 = arith.negf %15 : vector<1x128xf32>
    %17 = math.exp %16 : vector<1x128xf32>
    %cst_17 = arith.constant 1.000000e+00 : f32
    %18 = vector.broadcast %cst_17 : f32 to vector<1x128xf32>
    %19 = arith.addf %18, %17 : vector<1x128xf32>
    %20 = arith.divf %18, %19 : vector<1x128xf32>
    %21 = math.tanh %15 : vector<1x128xf32>
    %22 = vector.extract_strided_slice %20 {offsets = [0, 0], sizes = [1, 32], strides = [1, 1]} : vector<1x128xf32> to vector<1x32xf32>
    %23 = vector.extract_strided_slice %20 {offsets = [0, 32], sizes = [1, 32], strides = [1, 1]} : vector<1x128xf32> to vector<1x32xf32>
    %24 = vector.extract_strided_slice %21 {offsets = [0, 64], sizes = [1, 32], strides = [1, 1]} : vector<1x128xf32> to vector<1x32xf32>
    %25 = vector.extract_strided_slice %20 {offsets = [0, 96], sizes = [1, 32], strides = [1, 1]} : vector<1x128xf32> to vector<1x32xf32>
    %26 = arith.mulf %23, %10 : vector<1x32xf32>
    %27 = arith.mulf %22, %24 : vector<1x32xf32>
    %28 = arith.addf %26, %27 : vector<1x32xf32>
    %29 = math.tanh %28 : vector<1x32xf32>
    %30 = arith.mulf %25, %29 : vector<1x32xf32>
    %31 = vector.extract_strided_slice %8 {offsets = [0, 0], sizes = [1, 32], strides = [1, 1]} : vector<8x32xf32> to vector<1x32xf32>
    %32 = arith.mulf %30, %31 : vector<1x32xf32>
    %33 = vector.extract_strided_slice %2 {offsets = [1, 0], sizes = [1, 32], strides = [1, 1]} : vector<8x32xf32> to vector<1x32xf32>
    %cst_18 = arith.constant dense<0.000000e+00> : vector<1x128xf32>
    %34 = tpu.matmul %33, %3, %cst_18 {dimension_numbers = #tpu.dot_dimension_numbers<[1], [0], [0], [1], [0, 0, 1, 1], [], []>} : vector<1x32xf32>, vector<32x128xf32>, vector<1x128xf32> -> vector<1x128xf32>
    %cst_19 = arith.constant dense<0.000000e+00> : vector<1x128xf32>
    %35 = tpu.matmul %32, %4, %cst_19 {dimension_numbers = #tpu.dot_dimension_numbers<[1], [0], [0], [1], [0, 0, 1, 1], [], []>} : vector<1x32xf32>, vector<32x128xf32>, vector<1x128xf32> -> vector<1x128xf32>
    %36 = arith.addf %34, %35 : vector<1x128xf32>
    %37 = arith.addf %36, %7 : vector<1x128xf32>
    %38 = arith.negf %37 : vector<1x128xf32>
    %39 = math.exp %38 : vector<1x128xf32>
    %cst_20 = arith.constant 1.000000e+00 : f32
    %40 = vector.broadcast %cst_20 : f32 to vector<1x128xf32>
    %41 = arith.addf %40, %39 : vector<1x128xf32>
    %42 = arith.divf %40, %41 : vector<1x128xf32>
    %43 = math.tanh %37 : vector<1x128xf32>
    %44 = vector.extract_strided_slice %42 {offsets = [0, 0], sizes = [1, 32], strides = [1, 1]} : vector<1x128xf32> to vector<1x32xf32>
    %45 = vector.extract_strided_slice %42 {offsets = [0, 32], sizes = [1, 32], strides = [1, 1]} : vector<1x128xf32> to vector<1x32xf32>
    %46 = vector.extract_strided_slice %43 {offsets = [0, 64], sizes = [1, 32], strides = [1, 1]} : vector<1x128xf32> to vector<1x32xf32>
    %47 = vector.extract_strided_slice %42 {offsets = [0, 96], sizes = [1, 32], strides = [1, 1]} : vector<1x128xf32> to vector<1x32xf32>
    %48 = arith.mulf %45, %28 : vector<1x32xf32>
    %49 = arith.mulf %44, %46 : vector<1x32xf32>
    %50 = arith.addf %48, %49 : vector<1x32xf32>
    %51 = math.tanh %50 : vector<1x32xf32>
    %52 = arith.mulf %47, %51 : vector<1x32xf32>
    %53 = vector.extract_strided_slice %8 {offsets = [1, 0], sizes = [1, 32], strides = [1, 1]} : vector<8x32xf32> to vector<1x32xf32>
    %54 = arith.mulf %52, %53 : vector<1x32xf32>
    %55 = vector.extract_strided_slice %2 {offsets = [2, 0], sizes = [1, 32], strides = [1, 1]} : vector<8x32xf32> to vector<1x32xf32>
    %cst_21 = arith.constant dense<0.000000e+00> : vector<1x128xf32>
    %56 = tpu.matmul %55, %3, %cst_21 {dimension_numbers = #tpu.dot_dimension_numbers<[1], [0], [0], [1], [0, 0, 1, 1], [], []>} : vector<1x32xf32>, vector<32x128xf32>, vector<1x128xf32> -> vector<1x128xf32>
    %cst_22 = arith.constant dense<0.000000e+00> : vector<1x128xf32>
    %57 = tpu.matmul %54, %4, %cst_22 {dimension_numbers = #tpu.dot_dimension_numbers<[1], [0], [0], [1], [0, 0, 1, 1], [], []>} : vector<1x32xf32>, vector<32x128xf32>, vector<1x128xf32> -> vector<1x128xf32>
    %58 = arith.addf %56, %57 : vector<1x128xf32>
    %59 = arith.addf %58, %7 : vector<1x128xf32>
    %60 = arith.negf %59 : vector<1x128xf32>
    %61 = math.exp %60 : vector<1x128xf32>
    %cst_23 = arith.constant 1.000000e+00 : f32
    %62 = vector.broadcast %cst_23 : f32 to vector<1x128xf32>
    %63 = arith.addf %62, %61 : vector<1x128xf32>
    %64 = arith.divf %62, %63 : vector<1x128xf32>
    %65 = math.tanh %59 : vector<1x128xf32>
    %66 = vector.extract_strided_slice %64 {offsets = [0, 0], sizes = [1, 32], strides = [1, 1]} : vector<1x128xf32> to vector<1x32xf32>
    %67 = vector.extract_strided_slice %64 {offsets = [0, 32], sizes = [1, 32], strides = [1, 1]} : vector<1x128xf32> to vector<1x32xf32>
    %68 = vector.extract_strided_slice %65 {offsets = [0, 64], sizes = [1, 32], strides = [1, 1]} : vector<1x128xf32> to vector<1x32xf32>
    %69 = vector.extract_strided_slice %64 {offsets = [0, 96], sizes = [1, 32], strides = [1, 1]} : vector<1x128xf32> to vector<1x32xf32>
    %70 = arith.mulf %67, %50 : vector<1x32xf32>
    %71 = arith.mulf %66, %68 : vector<1x32xf32>
    %72 = arith.addf %70, %71 : vector<1x32xf32>
    %73 = math.tanh %72 : vector<1x32xf32>
    %74 = arith.mulf %69, %73 : vector<1x32xf32>
    %75 = vector.extract_strided_slice %8 {offsets = [2, 0], sizes = [1, 32], strides = [1, 1]} : vector<8x32xf32> to vector<1x32xf32>
    %76 = arith.mulf %74, %75 : vector<1x32xf32>
    %77 = vector.extract_strided_slice %2 {offsets = [3, 0], sizes = [1, 32], strides = [1, 1]} : vector<8x32xf32> to vector<1x32xf32>
    %cst_24 = arith.constant dense<0.000000e+00> : vector<1x128xf32>
    %78 = tpu.matmul %77, %3, %cst_24 {dimension_numbers = #tpu.dot_dimension_numbers<[1], [0], [0], [1], [0, 0, 1, 1], [], []>} : vector<1x32xf32>, vector<32x128xf32>, vector<1x128xf32> -> vector<1x128xf32>
    %cst_25 = arith.constant dense<0.000000e+00> : vector<1x128xf32>
    %79 = tpu.matmul %76, %4, %cst_25 {dimension_numbers = #tpu.dot_dimension_numbers<[1], [0], [0], [1], [0, 0, 1, 1], [], []>} : vector<1x32xf32>, vector<32x128xf32>, vector<1x128xf32> -> vector<1x128xf32>
    %80 = arith.addf %78, %79 : vector<1x128xf32>
    %81 = arith.addf %80, %7 : vector<1x128xf32>
    %82 = arith.negf %81 : vector<1x128xf32>
    %83 = math.exp %82 : vector<1x128xf32>
    %cst_26 = arith.constant 1.000000e+00 : f32
    %84 = vector.broadcast %cst_26 : f32 to vector<1x128xf32>
    %85 = arith.addf %84, %83 : vector<1x128xf32>
    %86 = arith.divf %84, %85 : vector<1x128xf32>
    %87 = math.tanh %81 : vector<1x128xf32>
    %88 = vector.extract_strided_slice %86 {offsets = [0, 0], sizes = [1, 32], strides = [1, 1]} : vector<1x128xf32> to vector<1x32xf32>
    %89 = vector.extract_strided_slice %86 {offsets = [0, 32], sizes = [1, 32], strides = [1, 1]} : vector<1x128xf32> to vector<1x32xf32>
    %90 = vector.extract_strided_slice %87 {offsets = [0, 64], sizes = [1, 32], strides = [1, 1]} : vector<1x128xf32> to vector<1x32xf32>
    %91 = vector.extract_strided_slice %86 {offsets = [0, 96], sizes = [1, 32], strides = [1, 1]} : vector<1x128xf32> to vector<1x32xf32>
    %92 = arith.mulf %89, %72 : vector<1x32xf32>
    %93 = arith.mulf %88, %90 : vector<1x32xf32>
    %94 = arith.addf %92, %93 : vector<1x32xf32>
    %95 = math.tanh %94 : vector<1x32xf32>
    %96 = arith.mulf %91, %95 : vector<1x32xf32>
    %97 = vector.extract_strided_slice %8 {offsets = [3, 0], sizes = [1, 32], strides = [1, 1]} : vector<8x32xf32> to vector<1x32xf32>
    %98 = arith.mulf %96, %97 : vector<1x32xf32>
    %99 = vector.extract_strided_slice %2 {offsets = [4, 0], sizes = [1, 32], strides = [1, 1]} : vector<8x32xf32> to vector<1x32xf32>
    %cst_27 = arith.constant dense<0.000000e+00> : vector<1x128xf32>
    %100 = tpu.matmul %99, %3, %cst_27 {dimension_numbers = #tpu.dot_dimension_numbers<[1], [0], [0], [1], [0, 0, 1, 1], [], []>} : vector<1x32xf32>, vector<32x128xf32>, vector<1x128xf32> -> vector<1x128xf32>
    %cst_28 = arith.constant dense<0.000000e+00> : vector<1x128xf32>
    %101 = tpu.matmul %98, %4, %cst_28 {dimension_numbers = #tpu.dot_dimension_numbers<[1], [0], [0], [1], [0, 0, 1, 1], [], []>} : vector<1x32xf32>, vector<32x128xf32>, vector<1x128xf32> -> vector<1x128xf32>
    %102 = arith.addf %100, %101 : vector<1x128xf32>
    %103 = arith.addf %102, %7 : vector<1x128xf32>
    %104 = arith.negf %103 : vector<1x128xf32>
    %105 = math.exp %104 : vector<1x128xf32>
    %cst_29 = arith.constant 1.000000e+00 : f32
    %106 = vector.broadcast %cst_29 : f32 to vector<1x128xf32>
    %107 = arith.addf %106, %105 : vector<1x128xf32>
    %108 = arith.divf %106, %107 : vector<1x128xf32>
    %109 = math.tanh %103 : vector<1x128xf32>
    %110 = vector.extract_strided_slice %108 {offsets = [0, 0], sizes = [1, 32], strides = [1, 1]} : vector<1x128xf32> to vector<1x32xf32>
    %111 = vector.extract_strided_slice %108 {offsets = [0, 32], sizes = [1, 32], strides = [1, 1]} : vector<1x128xf32> to vector<1x32xf32>
    %112 = vector.extract_strided_slice %109 {offsets = [0, 64], sizes = [1, 32], strides = [1, 1]} : vector<1x128xf32> to vector<1x32xf32>
    %113 = vector.extract_strided_slice %108 {offsets = [0, 96], sizes = [1, 32], strides = [1, 1]} : vector<1x128xf32> to vector<1x32xf32>
    %114 = arith.mulf %111, %94 : vector<1x32xf32>
    %115 = arith.mulf %110, %112 : vector<1x32xf32>
    %116 = arith.addf %114, %115 : vector<1x32xf32>
    %117 = math.tanh %116 : vector<1x32xf32>
    %118 = arith.mulf %113, %117 : vector<1x32xf32>
    %119 = vector.extract_strided_slice %8 {offsets = [4, 0], sizes = [1, 32], strides = [1, 1]} : vector<8x32xf32> to vector<1x32xf32>
    %120 = arith.mulf %118, %119 : vector<1x32xf32>
    %121 = vector.extract_strided_slice %2 {offsets = [5, 0], sizes = [1, 32], strides = [1, 1]} : vector<8x32xf32> to vector<1x32xf32>
    %cst_30 = arith.constant dense<0.000000e+00> : vector<1x128xf32>
    %122 = tpu.matmul %121, %3, %cst_30 {dimension_numbers = #tpu.dot_dimension_numbers<[1], [0], [0], [1], [0, 0, 1, 1], [], []>} : vector<1x32xf32>, vector<32x128xf32>, vector<1x128xf32> -> vector<1x128xf32>
    %cst_31 = arith.constant dense<0.000000e+00> : vector<1x128xf32>
    %123 = tpu.matmul %120, %4, %cst_31 {dimension_numbers = #tpu.dot_dimension_numbers<[1], [0], [0], [1], [0, 0, 1, 1], [], []>} : vector<1x32xf32>, vector<32x128xf32>, vector<1x128xf32> -> vector<1x128xf32>
    %124 = arith.addf %122, %123 : vector<1x128xf32>
    %125 = arith.addf %124, %7 : vector<1x128xf32>
    %126 = arith.negf %125 : vector<1x128xf32>
    %127 = math.exp %126 : vector<1x128xf32>
    %cst_32 = arith.constant 1.000000e+00 : f32
    %128 = vector.broadcast %cst_32 : f32 to vector<1x128xf32>
    %129 = arith.addf %128, %127 : vector<1x128xf32>
    %130 = arith.divf %128, %129 : vector<1x128xf32>
    %131 = math.tanh %125 : vector<1x128xf32>
    %132 = vector.extract_strided_slice %130 {offsets = [0, 0], sizes = [1, 32], strides = [1, 1]} : vector<1x128xf32> to vector<1x32xf32>
    %133 = vector.extract_strided_slice %130 {offsets = [0, 32], sizes = [1, 32], strides = [1, 1]} : vector<1x128xf32> to vector<1x32xf32>
    %134 = vector.extract_strided_slice %131 {offsets = [0, 64], sizes = [1, 32], strides = [1, 1]} : vector<1x128xf32> to vector<1x32xf32>
    %135 = vector.extract_strided_slice %130 {offsets = [0, 96], sizes = [1, 32], strides = [1, 1]} : vector<1x128xf32> to vector<1x32xf32>
    %136 = arith.mulf %133, %116 : vector<1x32xf32>
    %137 = arith.mulf %132, %134 : vector<1x32xf32>
    %138 = arith.addf %136, %137 : vector<1x32xf32>
    %139 = math.tanh %138 : vector<1x32xf32>
    %140 = arith.mulf %135, %139 : vector<1x32xf32>
    %141 = vector.extract_strided_slice %8 {offsets = [5, 0], sizes = [1, 32], strides = [1, 1]} : vector<8x32xf32> to vector<1x32xf32>
    %142 = arith.mulf %140, %141 : vector<1x32xf32>
    %143 = vector.extract_strided_slice %2 {offsets = [6, 0], sizes = [1, 32], strides = [1, 1]} : vector<8x32xf32> to vector<1x32xf32>
    %cst_33 = arith.constant dense<0.000000e+00> : vector<1x128xf32>
    %144 = tpu.matmul %143, %3, %cst_33 {dimension_numbers = #tpu.dot_dimension_numbers<[1], [0], [0], [1], [0, 0, 1, 1], [], []>} : vector<1x32xf32>, vector<32x128xf32>, vector<1x128xf32> -> vector<1x128xf32>
    %cst_34 = arith.constant dense<0.000000e+00> : vector<1x128xf32>
    %145 = tpu.matmul %142, %4, %cst_34 {dimension_numbers = #tpu.dot_dimension_numbers<[1], [0], [0], [1], [0, 0, 1, 1], [], []>} : vector<1x32xf32>, vector<32x128xf32>, vector<1x128xf32> -> vector<1x128xf32>
    %146 = arith.addf %144, %145 : vector<1x128xf32>
    %147 = arith.addf %146, %7 : vector<1x128xf32>
    %148 = arith.negf %147 : vector<1x128xf32>
    %149 = math.exp %148 : vector<1x128xf32>
    %cst_35 = arith.constant 1.000000e+00 : f32
    %150 = vector.broadcast %cst_35 : f32 to vector<1x128xf32>
    %151 = arith.addf %150, %149 : vector<1x128xf32>
    %152 = arith.divf %150, %151 : vector<1x128xf32>
    %153 = math.tanh %147 : vector<1x128xf32>
    %154 = vector.extract_strided_slice %152 {offsets = [0, 0], sizes = [1, 32], strides = [1, 1]} : vector<1x128xf32> to vector<1x32xf32>
    %155 = vector.extract_strided_slice %152 {offsets = [0, 32], sizes = [1, 32], strides = [1, 1]} : vector<1x128xf32> to vector<1x32xf32>
    %156 = vector.extract_strided_slice %153 {offsets = [0, 64], sizes = [1, 32], strides = [1, 1]} : vector<1x128xf32> to vector<1x32xf32>
    %157 = vector.extract_strided_slice %152 {offsets = [0, 96], sizes = [1, 32], strides = [1, 1]} : vector<1x128xf32> to vector<1x32xf32>
    %158 = arith.mulf %155, %138 : vector<1x32xf32>
    %159 = arith.mulf %154, %156 : vector<1x32xf32>
    %160 = arith.addf %158, %159 : vector<1x32xf32>
    %161 = math.tanh %160 : vector<1x32xf32>
    %162 = arith.mulf %157, %161 : vector<1x32xf32>
    %163 = vector.extract_strided_slice %8 {offsets = [6, 0], sizes = [1, 32], strides = [1, 1]} : vector<8x32xf32> to vector<1x32xf32>
    %164 = arith.mulf %162, %163 : vector<1x32xf32>
    %165 = vector.extract_strided_slice %2 {offsets = [7, 0], sizes = [1, 32], strides = [1, 1]} : vector<8x32xf32> to vector<1x32xf32>
    %cst_36 = arith.constant dense<0.000000e+00> : vector<1x128xf32>
    %166 = tpu.matmul %165, %3, %cst_36 {dimension_numbers = #tpu.dot_dimension_numbers<[1], [0], [0], [1], [0, 0, 1, 1], [], []>} : vector<1x32xf32>, vector<32x128xf32>, vector<1x128xf32> -> vector<1x128xf32>
    %cst_37 = arith.constant dense<0.000000e+00> : vector<1x128xf32>
    %167 = tpu.matmul %164, %4, %cst_37 {dimension_numbers = #tpu.dot_dimension_numbers<[1], [0], [0], [1], [0, 0, 1, 1], [], []>} : vector<1x32xf32>, vector<32x128xf32>, vector<1x128xf32> -> vector<1x128xf32>
    %168 = arith.addf %166, %167 : vector<1x128xf32>
    %169 = arith.addf %168, %7 : vector<1x128xf32>
    %170 = arith.negf %169 : vector<1x128xf32>
    %171 = math.exp %170 : vector<1x128xf32>
    %cst_38 = arith.constant 1.000000e+00 : f32
    %172 = vector.broadcast %cst_38 : f32 to vector<1x128xf32>
    %173 = arith.addf %172, %171 : vector<1x128xf32>
    %174 = arith.divf %172, %173 : vector<1x128xf32>
    %175 = math.tanh %169 : vector<1x128xf32>
    %176 = vector.extract_strided_slice %174 {offsets = [0, 0], sizes = [1, 32], strides = [1, 1]} : vector<1x128xf32> to vector<1x32xf32>
    %177 = vector.extract_strided_slice %174 {offsets = [0, 32], sizes = [1, 32], strides = [1, 1]} : vector<1x128xf32> to vector<1x32xf32>
    %178 = vector.extract_strided_slice %175 {offsets = [0, 64], sizes = [1, 32], strides = [1, 1]} : vector<1x128xf32> to vector<1x32xf32>
    %179 = vector.extract_strided_slice %174 {offsets = [0, 96], sizes = [1, 32], strides = [1, 1]} : vector<1x128xf32> to vector<1x32xf32>
    %180 = arith.mulf %177, %160 : vector<1x32xf32>
    %181 = arith.mulf %176, %178 : vector<1x32xf32>
    %182 = arith.addf %180, %181 : vector<1x32xf32>
    %183 = math.tanh %182 : vector<1x32xf32>
    %184 = arith.mulf %179, %183 : vector<1x32xf32>
    %185 = vector.extract_strided_slice %8 {offsets = [7, 0], sizes = [1, 32], strides = [1, 1]} : vector<8x32xf32> to vector<1x32xf32>
    %186 = arith.mulf %184, %185 : vector<1x32xf32>
    %187 = tpu.concatenate %32, %54, %76, %98, %120, %142, %164, %186 in 0 : vector<1x32xf32>, vector<1x32xf32>, vector<1x32xf32>, vector<1x32xf32>, vector<1x32xf32>, vector<1x32xf32>, vector<1x32xf32>, vector<1x32xf32> -> vector<8x32xf32>
    %c0_39 = arith.constant 0 : index
    %c0_40 = arith.constant 0 : index
    %188 = vector.load %arg6[%c0_39, %c0_40] : memref<32x128xf32, #tpu.memory_space<vmem>>, vector<32x128xf32>
    %cst_41 = arith.constant dense<0.000000e+00> : vector<8x128xf32>
    %189 = tpu.matmul %187, %188, %cst_41 {dimension_numbers = #tpu.dot_dimension_numbers<[1], [0], [0], [1], [0, 0, 1, 1], [], []>} : vector<8x32xf32>, vector<32x128xf32>, vector<8x128xf32> -> vector<8x128xf32>
    %c0_42 = arith.constant 0 : index
    %c0_43 = arith.constant 0 : index
    %190 = vector.load %arg7[%c0_42, %c0_43] : memref<1x128xf32, #tpu.memory_space<vmem>>, vector<1x128xf32>
    %191 = vector.broadcast %190 : vector<1x128xf32> to vector<8x128xf32>
    %192 = arith.addf %189, %191 : vector<8x128xf32>
    %c0_44 = arith.constant 0 : index
    %c0_45 = arith.constant 0 : index
    %193 = vector.load %arg9[%c0_44, %c0_45] : memref<8x128xf32, #tpu.memory_space<vmem>>, vector<8x128xf32>
    tpu.vector_store %arg9[%c0_44, %c0_45], %192 {strides = array<i32>} : memref<8x128xf32, #tpu.memory_space<vmem>>, vector<8x128xf32>,
    return
  }
}

</mosaic_0001>

<llo_original>
// kernel: tpu_custom_call.1
$region0: #{tpu_custom_call.1}
  #allocation0 [shape = 'u32[]', space=smem, size = 0x4, offset = 0x4, fixed_abs, tag = 'smem constant byte address 0x4 - core index']
  #allocation1 [shape = 'u32[144,128]{1,0:T(1,128)}', space=vmem, size = 0x12000, scoped, tag = 'internal scratch']
  %s0 = inlined_call_operand.hbm [shape: f32[8,64], index: 0, kind: input, shape index: {}]
  %s1 = inlined_call_operand.vmem [shape: f32[64,32], index: 1, kind: input, shape index: {}]
  %s2 = inlined_call_operand.vmem [shape: f32[32,128], index: 2, kind: input, shape index: {}]
  %s3 = inlined_call_operand.vmem [shape: f32[32,128], index: 3, kind: input, shape index: {}]
  %s4 = inlined_call_operand.vmem [shape: f32[1,128], index: 4, kind: input, shape index: {}]
  %s5 = inlined_call_operand.hbm [shape: f32[1,128], index: 5, kind: input, shape index: {}]
  %s6 = inlined_call_operand.vmem [shape: f32[32,128], index: 6, kind: input, shape index: {}]
  %s7 = inlined_call_operand.vmem [shape: f32[1,128], index: 7, kind: input, shape index: {}]
  %s8 = inlined_call_operand.vmem [shape: f32[8,32], index: 8, kind: input, shape index: {}]
  %s9 = inlined_call_operand.hbm [shape: f32[8,128], index: 9, kind: output, shape index: {}]
  %s10 = sld [smem:[#allocation0]]
  $region54: #{tpu_custom_call.1} parent=0
    _
  %s12 = ssub.s32 1, %s10
  %s13 = scalar_select 0, %s12, %s10
  $region1: #{tpu_custom_call.1} parent=0
    #allocation2 [shape = 'u8[4096]{0}', space=vmem, size = 0x1000, scoped, tag = 'input window, operand 0, single buffered']
    #allocation3 [shape = 's32[1]{0}', space=sflag, size = 0x4, scoped, tag = 'scoped memory for tpu_custom_call.1']
    #allocation4 [shape = 's32[1]{0}', space=sflag, size = 0x4, scoped, tag = 'scoped memory for tpu_custom_call.1']
    #allocation5 [shape = 'u8[512]{0}', space=vmem, size = 0x400, scoped, tag = 'input window, operand 5, single buffered']
    #allocation6 [shape = 's32[1]{0}', space=sflag, size = 0x4, scoped, tag = 'scoped memory for tpu_custom_call.1']
    #allocation7 [shape = 'u8[4096]{0}', space=vmem, size = 0x1000, scoped, tag = 'output window, operand 0, single buffered']
    %14 = vsyncpa [#allocation3], 0
    %15 = vsyncpa [#allocation6], 0
    %16 = vsyncpa [#allocation4], 0
    // Predicated region
    $region2: #{tpu_custom_call.1} parent=1 // pred_check
      _
    $region3: #{tpu_custom_call.1} parent=1 // pred_check_branch
      %18 = sbr.rel (0) target = $region5
    $region4: #{tpu_custom_call.1} parent=1 // pred_region
      %s20 = ssub.s32 128, 128
      %21 = vsyncadd [#allocation3], %s20
      %s23 = sshll.u32 [#allocation2], 4
      %s24 = int_to_ptr.vmem [resolvable:$true] %s23
      %26 = dma.hbm_to_vmem [thread:$0]  %s0, 128, %s24, [#allocation3]
    $region5: #{tpu_custom_call.1} parent=1 // pred_fallthru
      _
    // Predicated region
    $region6: #{tpu_custom_call.1} parent=1 // pred_check
      _
    $region7: #{tpu_custom_call.1} parent=1 // pred_check_branch
      %28 = sbr.rel (0) target = $region9
    $region8: #{tpu_custom_call.1} parent=1 // pred_region
      _
    $region9: #{tpu_custom_call.1} parent=1 // pred_fallthru
      _
    // Predicated region
    $region10: #{tpu_custom_call.1} parent=1 // pred_check
      _
    $region11: #{tpu_custom_call.1} parent=1 // pred_check_branch
      %30 = sbr.rel (0) target = $region13
    $region12: #{tpu_custom_call.1} parent=1 // pred_region
      _
    $region13: #{tpu_custom_call.1} parent=1 // pred_fallthru
      _
    // Predicated region
    $region14: #{tpu_custom_call.1} parent=1 // pred_check
      _
    $region15: #{tpu_custom_call.1} parent=1 // pred_check_branch
      %32 = sbr.rel (0) target = $region17
    $region16: #{tpu_custom_call.1} parent=1 // pred_region
      _
    $region17: #{tpu_custom_call.1} parent=1 // pred_fallthru
      _
    // Predicated region
    $region18: #{tpu_custom_call.1} parent=1 // pred_check
      _
    $region19: #{tpu_custom_call.1} parent=1 // pred_check_branch
      %34 = sbr.rel (0) target = $region21
    $region20: #{tpu_custom_call.1} parent=1 // pred_region
      _
    $region21: #{tpu_custom_call.1} parent=1 // pred_fallthru
      _
    // Predicated region
    $region22: #{tpu_custom_call.1} parent=1 // pred_check
      _
    $region23: #{tpu_custom_call.1} parent=1 // pred_check_branch
      %36 = sbr.rel (0) target = $region25
    $region24: #{tpu_custom_call.1} parent=1 // pred_region
      %s38 = ssub.s32 16, 16
      %39 = vsyncadd [#allocation6], %s38
      %s41 = sshll.u32 [#allocation5], 4
      %s42 = int_to_ptr.vmem [resolvable:$true] %s41
      %44 = dma.hbm_to_vmem [thread:$0]  %s5, 16, %s42, [#allocation6]
    $region25: #{tpu_custom_call.1} parent=1 // pred_fallthru
      _
    // Predicated region
    $region26: #{tpu_custom_call.1} parent=1 // pred_check
      _
    $region27: #{tpu_custom_call.1} parent=1 // pred_check_branch
      %46 = sbr.rel (0) target = $region29
    $region28: #{tpu_custom_call.1} parent=1 // pred_region
      _
    $region29: #{tpu_custom_call.1} parent=1 // pred_fallthru
      _
    // Predicated region
    $region30: #{tpu_custom_call.1} parent=1 // pred_check
      _
    $region31: #{tpu_custom_call.1} parent=1 // pred_check_branch
      %48 = sbr.rel (0) target = $region33
    $region32: #{tpu_custom_call.1} parent=1 // pred_region
      _
    $region33: #{tpu_custom_call.1} parent=1 // pred_fallthru
      _
    // Predicated region
    $region34: #{tpu_custom_call.1} parent=1 // pred_check
      _
    $region35: #{tpu_custom_call.1} parent=1 // pred_check_branch
      %50 = sbr.rel (0) target = $region37
    $region36: #{tpu_custom_call.1} parent=1 // pred_region
      _
    $region37: #{tpu_custom_call.1} parent=1 // pred_fallthru
      _
    // Predicated region
    $region38: #{tpu_custom_call.1} parent=1 // pred_check
      _
    $region39: #{tpu_custom_call.1} parent=1 // pred_check_branch
      %52 = sbr.rel (0) target = $region41
    $region40: #{tpu_custom_call.1} parent=1 // pred_region
      %53 = dma.done [#allocation3], 128
    $region41: #{tpu_custom_call.1} parent=1 // pred_fallthru
      _
    // Predicated region
    $region42: #{tpu_custom_call.1} parent=1 // pred_check
      _
    $region43: #{tpu_custom_call.1} parent=1 // pred_check_branch
      %55 = sbr.rel (0) target = $region45
    $region44: #{tpu_custom_call.1} parent=1 // pred_region
      %56 = dma.done [#allocation6], 16
    $region45: #{tpu_custom_call.1} parent=1 // pred_fallthru
      _
    %v57 = vld [vmem:[#allocation2] sm:$0xff]
    %v58 = vld [vmem:[%s1] sm:$0xff]
    %v59 = vld [vmem:[%s1 + $0x8] sm:$0xff]
    %v60 = vld [vmem:[%s1 + $0x10] sm:$0xff]
    %v61 = vld [vmem:[%s1 + $0x18] sm:$0xff]
    %v62 = vld [vmem:[%s1 + $0x20] sm:$0xff]
    %v63 = vld [vmem:[%s1 + $0x28] sm:$0xff]
    %v64 = vld [vmem:[%s1 + $0x30] sm:$0xff]
    %v65 = vld [vmem:[%s1 + $0x38] sm:$0xff]
    %vm66 = vcmask 523264
    %v68 = vsel %vm66, %v57, 0
    %70 = vmatprep.subr.mxu0 0.0
    %71 = vmatpush1.msra.mxu0 0.0
    %72 = vmatprep.subr.mxu0 0.0
    %73 = vmatpush1.msra.mxu0 0.0
    %74 = vmatprep.subr.mxu0 0.0
    %75 = vmatpush1.msra.mxu0 0.0
    %76 = vmatprep.subr.mxu0 0.0
    %77 = vmatpush1.msra.mxu0 0.0
    %78 = vmatprep.subr.mxu0 0.0
    %79 = vmatpush1.msra.mxu0 0.0
    %80 = vmatprep.subr.mxu0 0.0
    %81 = vmatpush1.msra.mxu0 0.0
    %82 = vmatprep.subr.mxu0 0.0
    %83 = vmatpush1.msra.mxu0 0.0
    %84 = vmatprep.subr.mxu0 0.0
    %85 = vmatpush1.msra.mxu0 0.0
    %86 = vmatprep.subr.mxu0 0.0
    %87 = vmatpush1.msra.mxu0 %v65
    %88 = vmatprep.subr.mxu0 0.0
    %89 = vmatpush1.msra.mxu0 %v64
    %90 = vmatprep.subr.mxu0 0.0
    %91 = vmatpush1.msra.mxu0 %v63
    %92 = vmatprep.subr.mxu0 0.0
    %93 = vmatpush1.msra.mxu0 %v62
    %94 = vmatprep.subr.mxu0 0.0
    %95 = vmatpush1.msra.mxu0 %v61
    %96 = vmatprep.subr.mxu0 0.0
    %97 = vmatpush1.msra.mxu0 %v60
    %98 = vmatprep.subr.mxu0 0.0
    %99 = vmatpush1.msra.mxu0 %v59
    %100 = vmatprep.subr.mxu0 0.0
    %101 = vmatpush1.msra.mxu0 %v58
    %102 = vmatprep.subr.mxu0 0.0
    %103 = vmatpush2.msra.mxu0 0.0
    %104 = vmatprep.subr.mxu0 0.0
    %105 = vmatpush2.msra.mxu0 0.0
    %106 = vmatprep.subr.mxu0 0.0
    %107 = vmatpush2.msra.mxu0 0.0
    %108 = vmatprep.subr.mxu0 0.0
    %109 = vmatpush2.msra.mxu0 0.0
    %110 = vmatprep.subr.mxu0 0.0
    %111 = vmatpush2.msra.mxu0 0.0
    %112 = vmatprep.subr.mxu0 0.0
    %113 = vmatpush2.msra.mxu0 0.0
    %114 = vmatprep.subr.mxu0 0.0
    %115 = vmatpush2.msra.mxu0 0.0
    %116 = vmatprep.subr.mxu0 0.0
    %117 = vmatpush2.msra.mxu0 0.0
    %118 = vmatprep.subr.mxu0 0.0
    %119 = vmatpush2.msra.mxu0 0.0
    %120 = vmatprep.subr.mxu0 0.0
    %121 = vmatpush2.msra.mxu0 0.0
    %122 = vmatprep.subr.mxu0 0.0
    %123 = vmatpush2.msra.mxu0 0.0
    %124 = vmatprep.subr.mxu0 0.0
    %125 = vmatpush2.msra.mxu0 0.0
    %126 = vmatprep.subr.mxu0 0.0
    %127 = vmatpush2.msra.mxu0 0.0
    %128 = vmatprep.subr.mxu0 0.0
    %129 = vmatpush2.msra.mxu0 0.0
    %130 = vmatprep.subr.mxu0 0.0
    %131 = vmatpush2.msra.mxu0 0.0
    %132 = vmatprep.subr.mxu0 0.0
    %133 = vmatpush2.msra.mxu0 0.0
    %134 = vmatprep.mubr.f32.mxu0 0.0
    %135 = vmatmul.mubr.f32.gmra.mxu0 %v68
    %v136 = vpop.f32.mrf.mxu0
    %v137 = vadd.f32 0.0, %v136
    %v138 = vpop.f32.mrf.mxu0
    %139 = vdwg.mxu0
    %v140 = vld [vmem:[%s2] sm:$0xff]
    %v141 = vld [vmem:[%s2 + $0x8] sm:$0xff]
    %v142 = vld [vmem:[%s2 + $0x10] sm:$0xff]
    %v143 = vld [vmem:[%s2 + $0x18] sm:$0xff]
    %v144 = vld [vmem:[%s3] sm:$0xff]
    %v145 = vld [vmem:[%s3 + $0x8] sm:$0xff]
    %v146 = vld [vmem:[%s3 + $0x10] sm:$0xff]
    %v147 = vld [vmem:[%s3 + $0x18] sm:$0xff]
    %v148 = vld [vmem:[%s4] sm:$0x1]
    %v149 = vld [vmem:[#allocation5] sm:$0x1]
    %v150 = vadd.f32 %v148, %v149
    %v151 = vld [vmem:[%s8] sm:$0xff]
    %vm152 = vcmask 261120
    %v154 = vsel %vm152, 0.0, 0
    %156 = vmatprep.subr.mxu0 0.0
    %157 = vmatpush1.msra.mxu0 0.0
    %158 = vmatprep.subr.mxu0 0.0
    %159 = vmatpush1.msra.mxu0 0.0
    %160 = vmatprep.subr.mxu0 0.0
    %161 = vmatpush1.msra.mxu0 0.0
    %162 = vmatprep.subr.mxu0 0.0
    %163 = vmatpush1.msra.mxu0 0.0
    %164 = vmatprep.subr.mxu0 0.0
    %165 = vmatpush1.msra.mxu0 0.0
    %166 = vmatprep.subr.mxu0 0.0
    %167 = vmatpush1.msra.mxu0 0.0
    %168 = vmatprep.subr.mxu0 0.0
    %169 = vmatpush1.msra.mxu0 0.0
    %170 = vmatprep.subr.mxu0 0.0
    %171 = vmatpush1.msra.mxu0 0.0
    %172 = vmatprep.subr.mxu0 0.0
    %173 = vmatpush1.msra.mxu0 0.0
    %174 = vmatprep.subr.mxu0 0.0
    %175 = vmatpush1.msra.mxu0 0.0
    %176 = vmatprep.subr.mxu0 0.0
    %177 = vmatpush1.msra.mxu0 0.0
    %178 = vmatprep.subr.mxu0 0.0
    %179 = vmatpush1.msra.mxu0 0.0
    %180 = vmatprep.subr.mxu0 0.0
    %181 = vmatpush1.msra.mxu0 %v147
    %182 = vmatprep.subr.mxu0 0.0
    %183 = vmatpush1.msra.mxu0 %v146
    %184 = vmatprep.subr.mxu0 0.0
    %185 = vmatpush1.msra.mxu0 %v145
    %186 = vmatprep.subr.mxu0 0.0
    %187 = vmatpush1.msra.mxu0 %v144
    %188 = vmatprep.subr.mxu0 0.0
    %189 = vmatpush2.msra.mxu0 0.0
    %190 = vmatprep.subr.mxu0 0.0
    %191 = vmatpush2.msra.mxu0 0.0
    %192 = vmatprep.subr.mxu0 0.0
    %193 = vmatpush2.msra.mxu0 0.0
    %194 = vmatprep.subr.mxu0 0.0
    %195 = vmatpush2.msra.mxu0 0.0
    %196 = vmatprep.subr.mxu0 0.0
    %197 = vmatpush2.msra.mxu0 0.0
    %198 = vmatprep.subr.mxu0 0.0
    %199 = vmatpush2.msra.mxu0 0.0
    %200 = vmatprep.subr.mxu0 0.0
    %201 = vmatpush2.msra.mxu0 0.0
    %202 = vmatprep.subr.mxu0 0.0
    %203 = vmatpush2.msra.mxu0 0.0
    %204 = vmatprep.subr.mxu0 0.0
    %205 = vmatpush2.msra.mxu0 0.0
    %206 = vmatprep.subr.mxu0 0.0
    %207 = vmatpush2.msra.mxu0 0.0
    %208 = vmatprep.subr.mxu0 0.0
    %209 = vmatpush2.msra.mxu0 0.0
    %210 = vmatprep.subr.mxu0 0.0
    %211 = vmatpush2.msra.mxu0 0.0
    %212 = vmatprep.subr.mxu0 0.0
    %213 = vmatpush2.msra.mxu0 0.0
    %214 = vmatprep.subr.mxu0 0.0
    %215 = vmatpush2.msra.mxu0 0.0
    %216 = vmatprep.subr.mxu0 0.0
    %217 = vmatpush2.msra.mxu0 0.0
    %218 = vmatprep.subr.mxu0 0.0
    %219 = vmatpush2.msra.mxu0 0.0
    %220 = vmatprep.mubr.f32.mxu0 0.0
    %221 = vmatmul.mubr.f32.gmra.mxu0 %v154
    %v222 = vpop.f32.mrf.mxu0
    %v223 = vadd.f32 0.0, %v222
    %v224 = vpop.f32.mrf.mxu0
    %225 = vdwg.mxu0
    %v227 = vsel %vm152, %v137, 0
    %229 = vmatprep.subr.mxu0 0.0
    %230 = vmatpush1.msra.mxu0 0.0
    %231 = vmatprep.subr.mxu0 0.0
    %232 = vmatpush1.msra.mxu0 0.0
    %233 = vmatprep.subr.mxu0 0.0
    %234 = vmatpush1.msra.mxu0 0.0
    %235 = vmatprep.subr.mxu0 0.0
    %236 = vmatpush1.msra.mxu0 0.0
    %237 = vmatprep.subr.mxu0 0.0
    %238 = vmatpush1.msra.mxu0 0.0
    %239 = vmatprep.subr.mxu0 0.0
    %240 = vmatpush1.msra.mxu0 0.0
    %241 = vmatprep.subr.mxu0 0.0
    %242 = vmatpush1.msra.mxu0 0.0
    %243 = vmatprep.subr.mxu0 0.0
    %244 = vmatpush1.msra.mxu0 0.0
    %245 = vmatprep.subr.mxu0 0.0
    %246 = vmatpush1.msra.mxu0 0.0
    %247 = vmatprep.subr.mxu0 0.0
    %248 = vmatpush1.msra.mxu0 0.0
    %249 = vmatprep.subr.mxu0 0.0
    %250 = vmatpush1.msra.mxu0 0.0
    %251 = vmatprep.subr.mxu0 0.0
    %252 = vmatpush1.msra.mxu0 0.0
    %253 = vmatprep.subr.mxu0 0.0
    %254 = vmatpush1.msra.mxu0 %v143
    %255 = vmatprep.subr.mxu0 0.0
    %256 = vmatpush1.msra.mxu0 %v142
    %257 = vmatprep.subr.mxu0 0.0
    %258 = vmatpush1.msra.mxu0 %v141
    %259 = vmatprep.subr.mxu0 0.0
    %260 = vmatpush1.msra.mxu0 %v140
    %261 = vmatprep.subr.mxu0 0.0
    %262 = vmatpush2.msra.mxu0 0.0
    %263 = vmatprep.subr.mxu0 0.0
    %264 = vmatpush2.msra.mxu0 0.0
    %265 = vmatprep.subr.mxu0 0.0
    %266 = vmatpush2.msra.mxu0 0.0
    %267 = vmatprep.subr.mxu0 0.0
    %268 = vmatpush2.msra.mxu0 0.0
    %269 = vmatprep.subr.mxu0 0.0
    %270 = vmatpush2.msra.mxu0 0.0
    %271 = vmatprep.subr.mxu0 0.0
    %272 = vmatpush2.msra.mxu0 0.0
    %273 = vmatprep.subr.mxu0 0.0
    %274 = vmatpush2.msra.mxu0 0.0
    %275 = vmatprep.subr.mxu0 0.0
    %276 = vmatpush2.msra.mxu0 0.0
    %277 = vmatprep.subr.mxu0 0.0
    %278 = vmatpush2.msra.mxu0 0.0
    %279 = vmatprep.subr.mxu0 0.0
    %280 = vmatpush2.msra.mxu0 0.0
    %281 = vmatprep.subr.mxu0 0.0
    %282 = vmatpush2.msra.mxu0 0.0
    %283 = vmatprep.subr.mxu0 0.0
    %284 = vmatpush2.msra.mxu0 0.0
    %285 = vmatprep.subr.mxu0 0.0
    %286 = vmatpush2.msra.mxu0 0.0
    %287 = vmatprep.subr.mxu0 0.0
    %288 = vmatpush2.msra.mxu0 0.0
    %289 = vmatprep.subr.mxu0 0.0
    %290 = vmatpush2.msra.mxu0 0.0
    %291 = vmatprep.subr.mxu0 0.0
    %292 = vmatpush2.msra.mxu0 0.0
    %293 = vmatprep.mubr.f32.mxu0 0.0
    %294 = vmatmul.mubr.f32.gmra.mxu0 %v227
    %v295 = vpop.f32.mrf.mxu0
    %v296 = vadd.f32 %v223, %v295
    %v297 = vpop.f32.mrf.mxu0
    %298 = vdwg.mxu0
    %v299 = vadd.f32 %v296, %v150
    %v300 = vxor.u32 %v299, 2147483648
    %v301 = vmul.f32 %v300, 1.442695
    %v302 = vpow.pop %v301
    %v303 = vadd.f32 %v302, 1.0
    %v304 = vrcp.pop %v303
    %v305 = vmul.f32 1.0, %v304
    %v306 = vtanh.pop %v299
    %v307 = vmul.f32 %v305, 0.0
    %309 = vrot.lane.b32.xlu0 %v306, 64
    %v310 = vpop.permute.xlu0 %309
    %v312 = vmul.f32 %v305, %v310
    %314 = vrot.lane.b32.xlu0 %v312, 32
    %v315 = vpop.permute.xlu0 %314
    %v317 = vadd.f32 %v307, %v315
    %v318 = vtanh.pop %v317
    %320 = vrot.lane.b32.xlu0 %v318, 64
    %v321 = vpop.permute.xlu0 %320
    %v323 = vmul.f32 %v305, %v321
    %325 = vrot.lane.b32.xlu0 %v151, 96
    %v326 = vpop.permute.xlu0 %325
    %v328 = vmul.f32 %v323, %v326
    %330 = vrot.lane.b32.xlu0 %v328, 32
    %v331 = vpop.permute.xlu0 %330
    %v332 = vsel %vm152, %v331, 0
    %334 = vmatprep.subr.mxu0 0.0
    %335 = vmatpush1.msra.mxu0 0.0
    %336 = vmatprep.subr.mxu0 0.0
    %337 = vmatpush1.msra.mxu0 0.0
    %338 = vmatprep.subr.mxu0 0.0
    %339 = vmatpush1.msra.mxu0 0.0
    %340 = vmatprep.subr.mxu0 0.0
    %341 = vmatpush1.msra.mxu0 0.0
    %342 = vmatprep.subr.mxu0 0.0
    %343 = vmatpush1.msra.mxu0 0.0
    %344 = vmatprep.subr.mxu0 0.0
    %345 = vmatpush1.msra.mxu0 0.0
    %346 = vmatprep.subr.mxu0 0.0
    %347 = vmatpush1.msra.mxu0 0.0
    %348 = vmatprep.subr.mxu0 0.0
    %349 = vmatpush1.msra.mxu0 0.0
    %350 = vmatprep.subr.mxu0 0.0
    %351 = vmatpush1.msra.mxu0 0.0
    %352 = vmatprep.subr.mxu0 0.0
    %353 = vmatpush1.msra.mxu0 0.0
    %354 = vmatprep.subr.mxu0 0.0
    %355 = vmatpush1.msra.mxu0 0.0
    %356 = vmatprep.subr.mxu0 0.0
    %357 = vmatpush1.msra.mxu0 0.0
    %358 = vmatprep.subr.mxu0 0.0
    %359 = vmatpush1.msra.mxu0 %v147
    %360 = vmatprep.subr.mxu0 0.0
    %361 = vmatpush1.msra.mxu0 %v146
    %362 = vmatprep.subr.mxu0 0.0
    %363 = vmatpush1.msra.mxu0 %v145
    %364 = vmatprep.subr.mxu0 0.0
    %365 = vmatpush1.msra.mxu0 %v144
    %366 = vmatprep.subr.mxu0 0.0
    %367 = vmatpush2.msra.mxu0 0.0
    %368 = vmatprep.subr.mxu0 0.0
    %369 = vmatpush2.msra.mxu0 0.0
    %370 = vmatprep.subr.mxu0 0.0
    %371 = vmatpush2.msra.mxu0 0.0
    %372 = vmatprep.subr.mxu0 0.0
    %373 = vmatpush2.msra.mxu0 0.0
    %374 = vmatprep.subr.mxu0 0.0
    %375 = vmatpush2.msra.mxu0 0.0
    %376 = vmatprep.subr.mxu0 0.0
    %377 = vmatpush2.msra.mxu0 0.0
    %378 = vmatprep.subr.mxu0 0.0
    %379 = vmatpush2.msra.mxu0 0.0
    %380 = vmatprep.subr.mxu0 0.0
    %381 = vmatpush2.msra.mxu0 0.0
    %382 = vmatprep.subr.mxu0 0.0
    %383 = vmatpush2.msra.mxu0 0.0
    %384 = vmatprep.subr.mxu0 0.0
    %385 = vmatpush2.msra.mxu0 0.0
    %386 = vmatprep.subr.mxu0 0.0
    %387 = vmatpush2.msra.mxu0 0.0
    %388 = vmatprep.subr.mxu0 0.0
    %389 = vmatpush2.msra.mxu0 0.0
    %390 = vmatprep.subr.mxu0 0.0
    %391 = vmatpush2.msra.mxu0 0.0
    %392 = vmatprep.subr.mxu0 0.0
    %393 = vmatpush2.msra.mxu0 0.0
    %394 = vmatprep.subr.mxu0 0.0
    %395 = vmatpush2.msra.mxu0 0.0
    %396 = vmatprep.subr.mxu0 0.0
    %397 = vmatpush2.msra.mxu0 0.0
    %398 = vmatprep.mubr.f32.mxu0 0.0
    %399 = vmatmul.mubr.f32.gmra.mxu0 %v332
    %v400 = vpop.f32.mrf.mxu0
    %v401 = vadd.f32 0.0, %v400
    %v402 = vpop.f32.mrf.mxu0
    %403 = vdwg.mxu0
    %v404 = vrot.slane %v137, 1
    %v405 = vsel %vm152, %v404, 0
    %407 = vmatprep.subr.mxu0 0.0
    %408 = vmatpush1.msra.mxu0 0.0
    %409 = vmatprep.subr.mxu0 0.0
    %410 = vmatpush1.msra.mxu0 0.0
    %411 = vmatprep.subr.mxu0 0.0
    %412 = vmatpush1.msra.mxu0 0.0
    %413 = vmatprep.subr.mxu0 0.0
    %414 = vmatpush1.msra.mxu0 0.0
    %415 = vmatprep.subr.mxu0 0.0
    %416 = vmatpush1.msra.mxu0 0.0
    %417 = vmatprep.subr.mxu0 0.0
    %418 = vmatpush1.msra.mxu0 0.0
    %419 = vmatprep.subr.mxu0 0.0
    %420 = vmatpush1.msra.mxu0 0.0
    %421 = vmatprep.subr.mxu0 0.0
    %422 = vmatpush1.msra.mxu0 0.0
    %423 = vmatprep.subr.mxu0 0.0
    %424 = vmatpush1.msra.mxu0 0.0
    %425 = vmatprep.subr.mxu0 0.0
    %426 = vmatpush1.msra.mxu0 0.0
    %427 = vmatprep.subr.mxu0 0.0
    %428 = vmatpush1.msra.mxu0 0.0
    %429 = vmatprep.subr.mxu0 0.0
    %430 = vmatpush1.msra.mxu0 0.0
    %431 = vmatprep.subr.mxu0 0.0
    %432 = vmatpush1.msra.mxu0 %v143
    %433 = vmatprep.subr.mxu0 0.0
    %434 = vmatpush1.msra.mxu0 %v142
    %435 = vmatprep.subr.mxu0 0.0
    %436 = vmatpush1.msra.mxu0 %v141
    %437 = vmatprep.subr.mxu0 0.0
    %438 = vmatpush1.msra.mxu0 %v140
    %439 = vmatprep.subr.mxu0 0.0
    %440 = vmatpush2.msra.mxu0 0.0
    %441 = vmatprep.subr.mxu0 0.0
    %442 = vmatpush2.msra.mxu0 0.0
    %443 = vmatprep.subr.mxu0 0.0
    %444 = vmatpush2.msra.mxu0 0.0
    %445 = vmatprep.subr.mxu0 0.0
    %446 = vmatpush2.msra.mxu0 0.0
    %447 = vmatprep.subr.mxu0 0.0
    %448 = vmatpush2.msra.mxu0 0.0
    %449 = vmatprep.subr.mxu0 0.0
    %450 = vmatpush2.msra.mxu0 0.0
    %451 = vmatprep.subr.mxu0 0.0
    %452 = vmatpush2.msra.mxu0 0.0
    %453 = vmatprep.subr.mxu0 0.0
    %454 = vmatpush2.msra.mxu0 0.0
    %455 = vmatprep.subr.mxu0 0.0
    %456 = vmatpush2.msra.mxu0 0.0
    %457 = vmatprep.subr.mxu0 0.0
    %458 = vmatpush2.msra.mxu0 0.0
    %459 = vmatprep.subr.mxu0 0.0
    %460 = vmatpush2.msra.mxu0 0.0
    %461 = vmatprep.subr.mxu0 0.0
    %462 = vmatpush2.msra.mxu0 0.0
    %463 = vmatprep.subr.mxu0 0.0
    %464 = vmatpush2.msra.mxu0 0.0
    %465 = vmatprep.subr.mxu0 0.0
    %466 = vmatpush2.msra.mxu0 0.0
    %467 = vmatprep.subr.mxu0 0.0
    %468 = vmatpush2.msra.mxu0 0.0
    %469 = vmatprep.subr.mxu0 0.0
    %470 = vmatpush2.msra.mxu0 0.0
    %471 = vmatprep.mubr.f32.mxu0 0.0
    %472 = vmatmul.mubr.f32.gmra.mxu0 %v405
    %v473 = vpop.f32.mrf.mxu0
    %v474 = vadd.f32 %v401, %v473
    %v475 = vpop.f32.mrf.mxu0
    %476 = vdwg.mxu0
    %v477 = vadd.f32 %v474, %v150
    %v478 = vxor.u32 %v477, 2147483648
    %v479 = vmul.f32 %v478, 1.442695
    %v480 = vpow.pop %v479
    %v481 = vadd.f32 %v480, 1.0
    %v482 = vrcp.pop %v481
    %v483 = vmul.f32 1.0, %v482
    %v484 = vtanh.pop %v477
    %v485 = vmul.f32 %v483, %v317
    %487 = vrot.lane.b32.xlu0 %v484, 64
    %v488 = vpop.permute.xlu0 %487
    %v490 = vmul.f32 %v483, %v488
    %492 = vrot.lane.b32.xlu0 %v490, 32
    %v493 = vpop.permute.xlu0 %492
    %v495 = vadd.f32 %v485, %v493
    %v496 = vtanh.pop %v495
    %498 = vrot.lane.b32.xlu0 %v496, 64
    %v499 = vpop.permute.xlu0 %498
    %v501 = vmul.f32 %v483, %v499
    %v502 = vrot.slane %v151, 1
    %503 = vrot.lane.b32.xlu0 %v502, 96
    %v504 = vpop.permute.xlu0 %503
    %v506 = vmul.f32 %v501, %v504
    %508 = vrot.lane.b32.xlu0 %v506, 32
    %v509 = vpop.permute.xlu0 %508
    %v510 = vsel %vm152, %v509, 0
    %512 = vmatprep.subr.mxu0 0.0
    %513 = vmatpush1.msra.mxu0 0.0
    %514 = vmatprep.subr.mxu0 0.0
    %515 = vmatpush1.msra.mxu0 0.0
    %516 = vmatprep.subr.mxu0 0.0
    %517 = vmatpush1.msra.mxu0 0.0
    %518 = vmatprep.subr.mxu0 0.0
    %519 = vmatpush1.msra.mxu0 0.0
    %520 = vmatprep.subr.mxu0 0.0
    %521 = vmatpush1.msra.mxu0 0.0
    %522 = vmatprep.subr.mxu0 0.0
    %523 = vmatpush1.msra.mxu0 0.0
    %524 = vmatprep.subr.mxu0 0.0
    %525 = vmatpush1.msra.mxu0 0.0
    %526 = vmatprep.subr.mxu0 0.0
    %527 = vmatpush1.msra.mxu0 0.0
    %528 = vmatprep.subr.mxu0 0.0
    %529 = vmatpush1.msra.mxu0 0.0
    %530 = vmatprep.subr.mxu0 0.0
    %531 = vmatpush1.msra.mxu0 0.0
    %532 = vmatprep.subr.mxu0 0.0
    %533 = vmatpush1.msra.mxu0 0.0
    %534 = vmatprep.subr.mxu0 0.0
    %535 = vmatpush1.msra.mxu0 0.0
    %536 = vmatprep.subr.mxu0 0.0
    %537 = vmatpush1.msra.mxu0 %v147
    %538 = vmatprep.subr.mxu0 0.0
    %539 = vmatpush1.msra.mxu0 %v146
    %540 = vmatprep.subr.mxu0 0.0
    %541 = vmatpush1.msra.mxu0 %v145
    %542 = vmatprep.subr.mxu0 0.0
    %543 = vmatpush1.msra.mxu0 %v144
    %544 = vmatprep.subr.mxu0 0.0
    %545 = vmatpush2.msra.mxu0 0.0
    %546 = vmatprep.subr.mxu0 0.0
    %547 = vmatpush2.msra.mxu0 0.0
    %548 = vmatprep.subr.mxu0 0.0
    %549 = vmatpush2.msra.mxu0 0.0
    %550 = vmatprep.subr.mxu0 0.0
    %551 = vmatpush2.msra.mxu0 0.0
    %552 = vmatprep.subr.mxu0 0.0
    %553 = vmatpush2.msra.mxu0 0.0
    %554 = vmatprep.subr.mxu0 0.0
    %555 = vmatpush2.msra.mxu0 0.0
    %556 = vmatprep.subr.mxu0 0.0
    %557 = vmatpush2.msra.mxu0 0.0
    %558 = vmatprep.subr.mxu0 0.0
    %559 = vmatpush2.msra.mxu0 0.0
    %560 = vmatprep.subr.mxu0 0.0
    %561 = vmatpush2.msra.mxu0 0.0
    %562 = vmatprep.subr.mxu0 0.0
    %563 = vmatpush2.msra.mxu0 0.0
    %564 = vmatprep.subr.mxu0 0.0
    %565 = vmatpush2.msra.mxu0 0.0
    %566 = vmatprep.subr.mxu0 0.0
    %567 = vmatpush2.msra.mxu0 0.0
    %568 = vmatprep.subr.mxu0 0.0
    %569 = vmatpush2.msra.mxu0 0.0
    %570 = vmatprep.subr.mxu0 0.0
    %571 = vmatpush2.msra.mxu0 0.0
    %572 = vmatprep.subr.mxu0 0.0
    %573 = vmatpush2.msra.mxu0 0.0
    %574 = vmatprep.subr.mxu0 0.0
    %575 = vmatpush2.msra.mxu0 0.0
    %576 = vmatprep.mubr.f32.mxu0 0.0
    %577 = vmatmul.mubr.f32.gmra.mxu0 %v510
    %v578 = vpop.f32.mrf.mxu0
    %v579 = vadd.f32 0.0, %v578
    %v580 = vpop.f32.mrf.mxu0
    %581 = vdwg.mxu0
    %v582 = vrot.slane %v137, 2
    %v583 = vsel %vm152, %v582, 0
    %585 = vmatprep.subr.mxu0 0.0
    %586 = vmatpush1.msra.mxu0 0.0
    %587 = vmatprep.subr.mxu0 0.0
    %588 = vmatpush1.msra.mxu0 0.0
    %589 = vmatprep.subr.mxu0 0.0
    %590 = vmatpush1.msra.mxu0 0.0
    %591 = vmatprep.subr.mxu0 0.0
    %592 = vmatpush1.msra.mxu0 0.0
    %593 = vmatprep.subr.mxu0 0.0
    %594 = vmatpush1.msra.mxu0 0.0
    %595 = vmatprep.subr.mxu0 0.0
    %596 = vmatpush1.msra.mxu0 0.0
    %597 = vmatprep.subr.mxu0 0.0
    %598 = vmatpush1.msra.mxu0 0.0
    %599 = vmatprep.subr.mxu0 0.0
    %600 = vmatpush1.msra.mxu0 0.0
    %601 = vmatprep.subr.mxu0 0.0
    %602 = vmatpush1.msra.mxu0 0.0
    %603 = vmatprep.subr.mxu0 0.0
    %604 = vmatpush1.msra.mxu0 0.0
    %605 = vmatprep.subr.mxu0 0.0
    %606 = vmatpush1.msra.mxu0 0.0
    %607 = vmatprep.subr.mxu0 0.0
    %608 = vmatpush1.msra.mxu0 0.0
    %609 = vmatprep.subr.mxu0 0.0
    %610 = vmatpush1.msra.mxu0 %v143
    %611 = vmatprep.subr.mxu0 0.0
    %612 = vmatpush1.msra.mxu0 %v142
    %613 = vmatprep.subr.mxu0 0.0
    %614 = vmatpush1.msra.mxu0 %v141
    %615 = vmatprep.subr.mxu0 0.0
    %616 = vmatpush1.msra.mxu0 %v140
    %617 = vmatprep.subr.mxu0 0.0
    %618 = vmatpush2.msra.mxu0 0.0
    %619 = vmatprep.subr.mxu0 0.0
    %620 = vmatpush2.msra.mxu0 0.0
    %621 = vmatprep.subr.mxu0 0.0
    %622 = vmatpush2.msra.mxu0 0.0
    %623 = vmatprep.subr.mxu0 0.0
    %624 = vmatpush2.msra.mxu0 0.0
    %625 = vmatprep.subr.mxu0 0.0
    %626 = vmatpush2.msra.mxu0 0.0
    %627 = vmatprep.subr.mxu0 0.0
    %628 = vmatpush2.msra.mxu0 0.0
    %629 = vmatprep.subr.mxu0 0.0
    %630 = vmatpush2.msra.mxu0 0.0
    %631 = vmatprep.subr.mxu0 0.0
    %632 = vmatpush2.msra.mxu0 0.0
    %633 = vmatprep.subr.mxu0 0.0
    %634 = vmatpush2.msra.mxu0 0.0
    %635 = vmatprep.subr.mxu0 0.0
    %636 = vmatpush2.msra.mxu0 0.0
    %637 = vmatprep.subr.mxu0 0.0
    %638 = vmatpush2.msra.mxu0 0.0
    %639 = vmatprep.subr.mxu0 0.0
    %640 = vmatpush2.msra.mxu0 0.0
    %641 = vmatprep.subr.mxu0 0.0
    %642 = vmatpush2.msra.mxu0 0.0
    %643 = vmatprep.subr.mxu0 0.0
    %644 = vmatpush2.msra.mxu0 0.0
    %645 = vmatprep.subr.mxu0 0.0
    %646 = vmatpush2.msra.mxu0 0.0
    %647 = vmatprep.subr.mxu0 0.0
    %648 = vmatpush2.msra.mxu0 0.0
    %649 = vmatprep.mubr.f32.mxu0 0.0
    %650 = vmatmul.mubr.f32.gmra.mxu0 %v583
    %v651 = vpop.f32.mrf.mxu0
    %v652 = vadd.f32 %v579, %v651
    %v653 = vpop.f32.mrf.mxu0
    %654 = vdwg.mxu0
    %v655 = vadd.f32 %v652, %v150
    %v656 = vxor.u32 %v655, 2147483648
    %v657 = vmul.f32 %v656, 1.442695
    %v658 = vpow.pop %v657
    %v659 = vadd.f32 %v658, 1.0
    %v660 = vrcp.pop %v659
    %v661 = vmul.f32 1.0, %v660
    %v662 = vtanh.pop %v655
    %v663 = vmul.f32 %v661, %v495
    %665 = vrot.lane.b32.xlu0 %v662, 64
    %v666 = vpop.permute.xlu0 %665
    %v668 = vmul.f32 %v661, %v666
    %670 = vrot.lane.b32.xlu0 %v668, 32
    %v671 = vpop.permute.xlu0 %670
    %v673 = vadd.f32 %v663, %v671
    %v674 = vtanh.pop %v673
    %676 = vrot.lane.b32.xlu0 %v674, 64
    %v677 = vpop.permute.xlu0 %676
    %v679 = vmul.f32 %v661, %v677
    %v680 = vrot.slane %v151, 2
    %681 = vrot.lane.b32.xlu0 %v680, 96
    %v682 = vpop.permute.xlu0 %681
    %v684 = vmul.f32 %v679, %v682
    %686 = vrot.lane.b32.xlu0 %v684, 32
    %v687 = vpop.permute.xlu0 %686
    %v688 = vsel %vm152, %v687, 0
    %690 = vmatprep.subr.mxu0 0.0
    %691 = vmatpush1.msra.mxu0 0.0
    %692 = vmatprep.subr.mxu0 0.0
    %693 = vmatpush1.msra.mxu0 0.0
    %694 = vmatprep.subr.mxu0 0.0
    %695 = vmatpush1.msra.mxu0 0.0
    %696 = vmatprep.subr.mxu0 0.0
    %697 = vmatpush1.msra.mxu0 0.0
    %698 = vmatprep.subr.mxu0 0.0
    %699 = vmatpush1.msra.mxu0 0.0
    %700 = vmatprep.subr.mxu0 0.0
    %701 = vmatpush1.msra.mxu0 0.0
    %702 = vmatprep.subr.mxu0 0.0
    %703 = vmatpush1.msra.mxu0 0.0
    %704 = vmatprep.subr.mxu0 0.0
    %705 = vmatpush1.msra.mxu0 0.0
    %706 = vmatprep.subr.mxu0 0.0
    %707 = vmatpush1.msra.mxu0 0.0
    %708 = vmatprep.subr.mxu0 0.0
    %709 = vmatpush1.msra.mxu0 0.0
    %710 = vmatprep.subr.mxu0 0.0
    %711 = vmatpush1.msra.mxu0 0.0
    %712 = vmatprep.subr.mxu0 0.0
    %713 = vmatpush1.msra.mxu0 0.0
    %714 = vmatprep.subr.mxu0 0.0
    %715 = vmatpush1.msra.mxu0 %v147
    %716 = vmatprep.subr.mxu0 0.0
    %717 = vmatpush1.msra.mxu0 %v146
    %718 = vmatprep.subr.mxu0 0.0
    %719 = vmatpush1.msra.mxu0 %v145
    %720 = vmatprep.subr.mxu0 0.0
    %721 = vmatpush1.msra.mxu0 %v144
    %722 = vmatprep.subr.mxu0 0.0
    %723 = vmatpush2.msra.mxu0 0.0
    %724 = vmatprep.subr.mxu0 0.0
    %725 = vmatpush2.msra.mxu0 0.0
    %726 = vmatprep.subr.mxu0 0.0
    %727 = vmatpush2.msra.mxu0 0.0
    %728 = vmatprep.subr.mxu0 0.0
    %729 = vmatpush2.msra.mxu0 0.0
    %730 = vmatprep.subr.mxu0 0.0
    %731 = vmatpush2.msra.mxu0 0.0
    %732 = vmatprep.subr.mxu0 0.0
    %733 = vmatpush2.msra.mxu0 0.0
    %734 = vmatprep.subr.mxu0 0.0
    %735 = vmatpush2.msra.mxu0 0.0
    %736 = vmatprep.subr.mxu0 0.0
    %737 = vmatpush2.msra.mxu0 0.0
    %738 = vmatprep.subr.mxu0 0.0
    %739 = vmatpush2.msra.mxu0 0.0
    %740 = vmatprep.subr.mxu0 0.0
    %741 = vmatpush2.msra.mxu0 0.0
    %742 = vmatprep.subr.mxu0 0.0
    %743 = vmatpush2.msra.mxu0 0.0
    %744 = vmatprep.subr.mxu0 0.0
    %745 = vmatpush2.msra.mxu0 0.0
    %746 = vmatprep.subr.mxu0 0.0
    %747 = vmatpush2.msra.mxu0 0.0
    %748 = vmatprep.subr.mxu0 0.0
    %749 = vmatpush2.msra.mxu0 0.0
    %750 = vmatprep.subr.mxu0 0.0
    %751 = vmatpush2.msra.mxu0 0.0
    %752 = vmatprep.subr.mxu0 0.0
    %753 = vmatpush2.msra.mxu0 0.0
    %754 = vmatprep.mubr.f32.mxu0 0.0
    %755 = vmatmul.mubr.f32.gmra.mxu0 %v688
    %v756 = vpop.f32.mrf.mxu0
    %v757 = vadd.f32 0.0, %v756
    %v758 = vpop.f32.mrf.mxu0
    %759 = vdwg.mxu0
    %v760 = vrot.slane %v137, 3
    %v761 = vsel %vm152, %v760, 0
    %763 = vmatprep.subr.mxu0 0.0
    %764 = vmatpush1.msra.mxu0 0.0
    %765 = vmatprep.subr.mxu0 0.0
    %766 = vmatpush1.msra.mxu0 0.0
    %767 = vmatprep.subr.mxu0 0.0
    %768 = vmatpush1.msra.mxu0 0.0
    %769 = vmatprep.subr.mxu0 0.0
    %770 = vmatpush1.msra.mxu0 0.0
    %771 = vmatprep.subr.mxu0 0.0
    %772 = vmatpush1.msra.mxu0 0.0
    %773 = vmatprep.subr.mxu0 0.0
    %774 = vmatpush1.msra.mxu0 0.0
    %775 = vmatprep.subr.mxu0 0.0
    %776 = vmatpush1.msra.mxu0 0.0
    %777 = vmatprep.subr.mxu0 0.0
    %778 = vmatpush1.msra.mxu0 0.0
    %779 = vmatprep.subr.mxu0 0.0
    %780 = vmatpush1.msra.mxu0 0.0
    %781 = vmatprep.subr.mxu0 0.0
    %782 = vmatpush1.msra.mxu0 0.0
    %783 = vmatprep.subr.mxu0 0.0
    %784 = vmatpush1.msra.mxu0 0.0
    %785 = vmatprep.subr.mxu0 0.0
    %786 = vmatpush1.msra.mxu0 0.0
    %787 = vmatprep.subr.mxu0 0.0
    %788 = vmatpush1.msra.mxu0 %v143
    %789 = vmatprep.subr.mxu0 0.0
    %790 = vmatpush1.msra.mxu0 %v142
    %791 = vmatprep.subr.mxu0 0.0
    %792 = vmatpush1.msra.mxu0 %v141
    %793 = vmatprep.subr.mxu0 0.0
    %794 = vmatpush1.msra.mxu0 %v140
    %795 = vmatprep.subr.mxu0 0.0
    %796 = vmatpush2.msra.mxu0 0.0
    %797 = vmatprep.subr.mxu0 0.0
    %798 = vmatpush2.msra.mxu0 0.0
    %799 = vmatprep.subr.mxu0 0.0
    %800 = vmatpush2.msra.mxu0 0.0
    %801 = vmatprep.subr.mxu0 0.0
    %802 = vmatpush2.msra.mxu0 0.0
    %803 = vmatprep.subr.mxu0 0.0
    %804 = vmatpush2.msra.mxu0 0.0
    %805 = vmatprep.subr.mxu0 0.0
    %806 = vmatpush2.msra.mxu0 0.0
    %807 = vmatprep.subr.mxu0 0.0
    %808 = vmatpush2.msra.mxu0 0.0
    %809 = vmatprep.subr.mxu0 0.0
    %810 = vmatpush2.msra.mxu0 0.0
    %811 = vmatprep.subr.mxu0 0.0
    %812 = vmatpush2.msra.mxu0 0.0
    %813 = vmatprep.subr.mxu0 0.0
    %814 = vmatpush2.msra.mxu0 0.0
    %815 = vmatprep.subr.mxu0 0.0
    %816 = vmatpush2.msra.mxu0 0.0
    %817 = vmatprep.subr.mxu0 0.0
    %818 = vmatpush2.msra.mxu0 0.0
    %819 = vmatprep.subr.mxu0 0.0
    %820 = vmatpush2.msra.mxu0 0.0
    %821 = vmatprep.subr.mxu0 0.0
    %822 = vmatpush2.msra.mxu0 0.0
    %823 = vmatprep.subr.mxu0 0.0
    %824 = vmatpush2.msra.mxu0 0.0
    %825 = vmatprep.subr.mxu0 0.0
    %826 = vmatpush2.msra.mxu0 0.0
    %827 = vmatprep.mubr.f32.mxu0 0.0
    %828 = vmatmul.mubr.f32.gmra.mxu0 %v761
    %v829 = vpop.f32.mrf.mxu0
    %v830 = vadd.f32 %v757, %v829
    %v831 = vpop.f32.mrf.mxu0
    %832 = vdwg.mxu0
    %v833 = vadd.f32 %v830, %v150
    %v834 = vxor.u32 %v833, 2147483648
    %v835 = vmul.f32 %v834, 1.442695
    %v836 = vpow.pop %v835
    %v837 = vadd.f32 %v836, 1.0
    %v838 = vrcp.pop %v837
    %v839 = vmul.f32 1.0, %v838
    %v840 = vtanh.pop %v833
    %v841 = vmul.f32 %v839, %v673
    %843 = vrot.lane.b32.xlu0 %v840, 64
    %v844 = vpop.permute.xlu0 %843
    %v846 = vmul.f32 %v839, %v844
    %848 = vrot.lane.b32.xlu0 %v846, 32
    %v849 = vpop.permute.xlu0 %848
    %v851 = vadd.f32 %v841, %v849
    %v852 = vtanh.pop %v851
    %854 = vrot.lane.b32.xlu0 %v852, 64
    %v855 = vpop.permute.xlu0 %854
    %v857 = vmul.f32 %v839, %v855
    %v858 = vrot.slane %v151, 3
    %859 = vrot.lane.b32.xlu0 %v858, 96
    %v860 = vpop.permute.xlu0 %859
    %v862 = vmul.f32 %v857, %v860
    %864 = vrot.lane.b32.xlu0 %v862, 32
    %v865 = vpop.permute.xlu0 %864
    %v866 = vsel %vm152, %v865, 0
    %868 = vmatprep.subr.mxu0 0.0
    %869 = vmatpush1.msra.mxu0 0.0
    %870 = vmatprep.subr.mxu0 0.0
    %871 = vmatpush1.msra.mxu0 0.0
    %872 = vmatprep.subr.mxu0 0.0
    %873 = vmatpush1.msra.mxu0 0.0
    %874 = vmatprep.subr.mxu0 0.0
    %875 = vmatpush1.msra.mxu0 0.0
    %876 = vmatprep.subr.mxu0 0.0
    %877 = vmatpush1.msra.mxu0 0.0
    %878 = vmatprep.subr.mxu0 0.0
    %879 = vmatpush1.msra.mxu0 0.0
    %880 = vmatprep.subr.mxu0 0.0
    %881 = vmatpush1.msra.mxu0 0.0
    %882 = vmatprep.subr.mxu0 0.0
    %883 = vmatpush1.msra.mxu0 0.0
    %884 = vmatprep.subr.mxu0 0.0
    %885 = vmatpush1.msra.mxu0 0.0
    %886 = vmatprep.subr.mxu0 0.0
    %887 = vmatpush1.msra.mxu0 0.0
    %888 = vmatprep.subr.mxu0 0.0
    %889 = vmatpush1.msra.mxu0 0.0
    %890 = vmatprep.subr.mxu0 0.0
    %891 = vmatpush1.msra.mxu0 0.0
    %892 = vmatprep.subr.mxu0 0.0
    %893 = vmatpush1.msra.mxu0 %v147
    %894 = vmatprep.subr.mxu0 0.0
    %895 = vmatpush1.msra.mxu0 %v146
    %896 = vmatprep.subr.mxu0 0.0
    %897 = vmatpush1.msra.mxu0 %v145
    %898 = vmatprep.subr.mxu0 0.0
    %899 = vmatpush1.msra.mxu0 %v144
    %900 = vmatprep.subr.mxu0 0.0
    %901 = vmatpush2.msra.mxu0 0.0
    %902 = vmatprep.subr.mxu0 0.0
    %903 = vmatpush2.msra.mxu0 0.0
    %904 = vmatprep.subr.mxu0 0.0
    %905 = vmatpush2.msra.mxu0 0.0
    %906 = vmatprep.subr.mxu0 0.0
    %907 = vmatpush2.msra.mxu0 0.0
    %908 = vmatprep.subr.mxu0 0.0
    %909 = vmatpush2.msra.mxu0 0.0
    %910 = vmatprep.subr.mxu0 0.0
    %911 = vmatpush2.msra.mxu0 0.0
    %912 = vmatprep.subr.mxu0 0.0
    %913 = vmatpush2.msra.mxu0 0.0
    %914 = vmatprep.subr.mxu0 0.0
    %915 = vmatpush2.msra.mxu0 0.0
    %916 = vmatprep.subr.mxu0 0.0
    %917 = vmatpush2.msra.mxu0 0.0
    %918 = vmatprep.subr.mxu0 0.0
    %919 = vmatpush2.msra.mxu0 0.0
    %920 = vmatprep.subr.mxu0 0.0
    %921 = vmatpush2.msra.mxu0 0.0
    %922 = vmatprep.subr.mxu0 0.0
    %923 = vmatpush2.msra.mxu0 0.0
    %924 = vmatprep.subr.mxu0 0.0
    %925 = vmatpush2.msra.mxu0 0.0
    %926 = vmatprep.subr.mxu0 0.0
    %927 = vmatpush2.msra.mxu0 0.0
    %928 = vmatprep.subr.mxu0 0.0
    %929 = vmatpush2.msra.mxu0 0.0
    %930 = vmatprep.subr.mxu0 0.0
    %931 = vmatpush2.msra.mxu0 0.0
    %932 = vmatprep.mubr.f32.mxu0 0.0
    %933 = vmatmul.mubr.f32.gmra.mxu0 %v866
    %v934 = vpop.f32.mrf.mxu0
    %v935 = vadd.f32 0.0, %v934
    %v936 = vpop.f32.mrf.mxu0
    %937 = vdwg.mxu0
    %v938 = vrot.slane %v137, 4
    %v939 = vsel %vm152, %v938, 0
    %941 = vmatprep.subr.mxu0 0.0
    %942 = vmatpush1.msra.mxu0 0.0
    %943 = vmatprep.subr.mxu0 0.0
    %944 = vmatpush1.msra.mxu0 0.0
    %945 = vmatprep.subr.mxu0 0.0
    %946 = vmatpush1.msra.mxu0 0.0
    %947 = vmatprep.subr.mxu0 0.0
    %948 = vmatpush1.msra.mxu0 0.0
    %949 = vmatprep.subr.mxu0 0.0
    %950 = vmatpush1.msra.mxu0 0.0
    %951 = vmatprep.subr.mxu0 0.0
    %952 = vmatpush1.msra.mxu0 0.0
    %953 = vmatprep.subr.mxu0 0.0
    %954 = vmatpush1.msra.mxu0 0.0
    %955 = vmatprep.subr.mxu0 0.0
    %956 = vmatpush1.msra.mxu0 0.0
    %957 = vmatprep.subr.mxu0 0.0
    %958 = vmatpush1.msra.mxu0 0.0
    %959 = vmatprep.subr.mxu0 0.0
    %960 = vmatpush1.msra.mxu0 0.0
    %961 = vmatprep.subr.mxu0 0.0
    %962 = vmatpush1.msra.mxu0 0.0
    %963 = vmatprep.subr.mxu0 0.0
    %964 = vmatpush1.msra.mxu0 0.0
    %965 = vmatprep.subr.mxu0 0.0
    %966 = vmatpush1.msra.mxu0 %v143
    %967 = vmatprep.subr.mxu0 0.0
    %968 = vmatpush1.msra.mxu0 %v142
    %969 = vmatprep.subr.mxu0 0.0
    %970 = vmatpush1.msra.mxu0 %v141
    %971 = vmatprep.subr.mxu0 0.0
    %972 = vmatpush1.msra.mxu0 %v140
    %973 = vmatprep.subr.mxu0 0.0
    %974 = vmatpush2.msra.mxu0 0.0
    %975 = vmatprep.subr.mxu0 0.0
    %976 = vmatpush2.msra.mxu0 0.0
    %977 = vmatprep.subr.mxu0 0.0
    %978 = vmatpush2.msra.mxu0 0.0
    %979 = vmatprep.subr.mxu0 0.0
    %980 = vmatpush2.msra.mxu0 0.0
    %981 = vmatprep.subr.mxu0 0.0
    %982 = vmatpush2.msra.mxu0 0.0
    %983 = vmatprep.subr.mxu0 0.0
    %984 = vmatpush2.msra.mxu0 0.0
    %985 = vmatprep.subr.mxu0 0.0
    %986 = vmatpush2.msra.mxu0 0.0
    %987 = vmatprep.subr.mxu0 0.0
    %988 = vmatpush2.msra.mxu0 0.0
    %989 = vmatprep.subr.mxu0 0.0
    %990 = vmatpush2.msra.mxu0 0.0
    %991 = vmatprep.subr.mxu0 0.0
    %992 = vmatpush2.msra.mxu0 0.0
    %993 = vmatprep.subr.mxu0 0.0
    %994 = vmatpush2.msra.mxu0 0.0
    %995 = vmatprep.subr.mxu0 0.0
    %996 = vmatpush2.msra.mxu0 0.0
    %997 = vmatprep.subr.mxu0 0.0
    %998 = vmatpush2.msra.mxu0 0.0
    %999 = vmatprep.subr.mxu0 0.0
    %1000 = vmatpush2.msra.mxu0 0.0
    %1001 = vmatprep.subr.mxu0 0.0
    %1002 = vmatpush2.msra.mxu0 0.0
    %1003 = vmatprep.subr.mxu0 0.0
    %1004 = vmatpush2.msra.mxu0 0.0
    %1005 = vmatprep.mubr.f32.mxu0 0.0
    %1006 = vmatmul.mubr.f32.gmra.mxu0 %v939
    %v1007 = vpop.f32.mrf.mxu0
    %v1008 = vadd.f32 %v935, %v1007
    %v1009 = vpop.f32.mrf.mxu0
    %1010 = vdwg.mxu0
    %v1011 = vadd.f32 %v1008, %v150
    %v1012 = vxor.u32 %v1011, 2147483648
    %v1013 = vmul.f32 %v1012, 1.442695
    %v1014 = vpow.pop %v1013
    %v1015 = vadd.f32 %v1014, 1.0
    %v1016 = vrcp.pop %v1015
    %v1017 = vmul.f32 1.0, %v1016
    %v1018 = vtanh.pop %v1011
    %v1019 = vmul.f32 %v1017, %v851
    %1021 = vrot.lane.b32.xlu0 %v1018, 64
    %v1022 = vpop.permute.xlu0 %1021
    %v1024 = vmul.f32 %v1017, %v1022
    %1026 = vrot.lane.b32.xlu0 %v1024, 32
    %v1027 = vpop.permute.xlu0 %1026
    %v1029 = vadd.f32 %v1019, %v1027
    %v1030 = vtanh.pop %v1029
    %1032 = vrot.lane.b32.xlu0 %v1030, 64
    %v1033 = vpop.permute.xlu0 %1032
    %v1035 = vmul.f32 %v1017, %v1033
    %v1036 = vrot.slane %v151, 4
    %1037 = vrot.lane.b32.xlu0 %v1036, 96
    %v1038 = vpop.permute.xlu0 %1037
    %v1040 = vmul.f32 %v1035, %v1038
    %1042 = vrot.lane.b32.xlu0 %v1040, 32
    %v1043 = vpop.permute.xlu0 %1042
    %v1044 = vsel %vm152, %v1043, 0
    %1046 = vmatprep.subr.mxu0 0.0
    %1047 = vmatpush1.msra.mxu0 0.0
    %1048 = vmatprep.subr.mxu0 0.0
    %1049 = vmatpush1.msra.mxu0 0.0
    %1050 = vmatprep.subr.mxu0 0.0
    %1051 = vmatpush1.msra.mxu0 0.0
    %1052 = vmatprep.subr.mxu0 0.0
    %1053 = vmatpush1.msra.mxu0 0.0
    %1054 = vmatprep.subr.mxu0 0.0
    %1055 = vmatpush1.msra.mxu0 0.0
    %1056 = vmatprep.subr.mxu0 0.0
    %1057 = vmatpush1.msra.mxu0 0.0
    %1058 = vmatprep.subr.mxu0 0.0
    %1059 = vmatpush1.msra.mxu0 0.0
    %1060 = vmatprep.subr.mxu0 0.0
    %1061 = vmatpush1.msra.mxu0 0.0
    %1062 = vmatprep.subr.mxu0 0.0
    %1063 = vmatpush1.msra.mxu0 0.0
    %1064 = vmatprep.subr.mxu0 0.0
    %1065 = vmatpush1.msra.mxu0 0.0
    %1066 = vmatprep.subr.mxu0 0.0
    %1067 = vmatpush1.msra.mxu0 0.0
    %1068 = vmatprep.subr.mxu0 0.0
    %1069 = vmatpush1.msra.mxu0 0.0
    %1070 = vmatprep.subr.mxu0 0.0
    %1071 = vmatpush1.msra.mxu0 %v147
    %1072 = vmatprep.subr.mxu0 0.0
    %1073 = vmatpush1.msra.mxu0 %v146
    %1074 = vmatprep.subr.mxu0 0.0
    %1075 = vmatpush1.msra.mxu0 %v145
    %1076 = vmatprep.subr.mxu0 0.0
    %1077 = vmatpush1.msra.mxu0 %v144
    %1078 = vmatprep.subr.mxu0 0.0
    %1079 = vmatpush2.msra.mxu0 0.0
    %1080 = vmatprep.subr.mxu0 0.0
    %1081 = vmatpush2.msra.mxu0 0.0
    %1082 = vmatprep.subr.mxu0 0.0
    %1083 = vmatpush2.msra.mxu0 0.0
    %1084 = vmatprep.subr.mxu0 0.0
    %1085 = vmatpush2.msra.mxu0 0.0
    %1086 = vmatprep.subr.mxu0 0.0
    %1087 = vmatpush2.msra.mxu0 0.0
    %1088 = vmatprep.subr.mxu0 0.0
    %1089 = vmatpush2.msra.mxu0 0.0
    %1090 = vmatprep.subr.mxu0 0.0
    %1091 = vmatpush2.msra.mxu0 0.0
    %1092 = vmatprep.subr.mxu0 0.0
    %1093 = vmatpush2.msra.mxu0 0.0
    %1094 = vmatprep.subr.mxu0 0.0
    %1095 = vmatpush2.msra.mxu0 0.0
    %1096 = vmatprep.subr.mxu0 0.0
    %1097 = vmatpush2.msra.mxu0 0.0
    %1098 = vmatprep.subr.mxu0 0.0
    %1099 = vmatpush2.msra.mxu0 0.0
    %1100 = vmatprep.subr.mxu0 0.0
    %1101 = vmatpush2.msra.mxu0 0.0
    %1102 = vmatprep.subr.mxu0 0.0
    %1103 = vmatpush2.msra.mxu0 0.0
    %1104 = vmatprep.subr.mxu0 0.0
    %1105 = vmatpush2.msra.mxu0 0.0
    %1106 = vmatprep.subr.mxu0 0.0
    %1107 = vmatpush2.msra.mxu0 0.0
    %1108 = vmatprep.subr.mxu0 0.0
    %1109 = vmatpush2.msra.mxu0 0.0
    %1110 = vmatprep.mubr.f32.mxu0 0.0
    %1111 = vmatmul.mubr.f32.gmra.mxu0 %v1044
    %v1112 = vpop.f32.mrf.mxu0
    %v1113 = vadd.f32 0.0, %v1112
    %v1114 = vpop.f32.mrf.mxu0
    %1115 = vdwg.mxu0
    %v1116 = vrot.slane %v137, 5
    %v1117 = vsel %vm152, %v1116, 0
    %1119 = vmatprep.subr.mxu0 0.0
    %1120 = vmatpush1.msra.mxu0 0.0
    %1121 = vmatprep.subr.mxu0 0.0
    %1122 = vmatpush1.msra.mxu0 0.0
    %1123 = vmatprep.subr.mxu0 0.0
    %1124 = vmatpush1.msra.mxu0 0.0
    %1125 = vmatprep.subr.mxu0 0.0
    %1126 = vmatpush1.msra.mxu0 0.0
    %1127 = vmatprep.subr.mxu0 0.0
    %1128 = vmatpush1.msra.mxu0 0.0
    %1129 = vmatprep.subr.mxu0 0.0
    %1130 = vmatpush1.msra.mxu0 0.0
    %1131 = vmatprep.subr.mxu0 0.0
    %1132 = vmatpush1.msra.mxu0 0.0
    %1133 = vmatprep.subr.mxu0 0.0
    %1134 = vmatpush1.msra.mxu0 0.0
    %1135 = vmatprep.subr.mxu0 0.0
    %1136 = vmatpush1.msra.mxu0 0.0
    %1137 = vmatprep.subr.mxu0 0.0
    %1138 = vmatpush1.msra.mxu0 0.0
    %1139 = vmatprep.subr.mxu0 0.0
    %1140 = vmatpush1.msra.mxu0 0.0
    %1141 = vmatprep.subr.mxu0 0.0
    %1142 = vmatpush1.msra.mxu0 0.0
    %1143 = vmatprep.subr.mxu0 0.0
    %1144 = vmatpush1.msra.mxu0 %v143
    %1145 = vmatprep.subr.mxu0 0.0
    %1146 = vmatpush1.msra.mxu0 %v142
    %1147 = vmatprep.subr.mxu0 0.0
    %1148 = vmatpush1.msra.mxu0 %v141
    %1149 = vmatprep.subr.mxu0 0.0
    %1150 = vmatpush1.msra.mxu0 %v140
    %1151 = vmatprep.subr.mxu0 0.0
    %1152 = vmatpush2.msra.mxu0 0.0
    %1153 = vmatprep.subr.mxu0 0.0
    %1154 = vmatpush2.msra.mxu0 0.0
    %1155 = vmatprep.subr.mxu0 0.0
    %1156 = vmatpush2.msra.mxu0 0.0
    %1157 = vmatprep.subr.mxu0 0.0
    %1158 = vmatpush2.msra.mxu0 0.0
    %1159 = vmatprep.subr.mxu0 0.0
    %1160 = vmatpush2.msra.mxu0 0.0
    %1161 = vmatprep.subr.mxu0 0.0
    %1162 = vmatpush2.msra.mxu0 0.0
    %1163 = vmatprep.subr.mxu0 0.0
    %1164 = vmatpush2.msra.mxu0 0.0
    %1165 = vmatprep.subr.mxu0 0.0
    %1166 = vmatpush2.msra.mxu0 0.0
    %1167 = vmatprep.subr.mxu0 0.0
    %1168 = vmatpush2.msra.mxu0 0.0
    %1169 = vmatprep.subr.mxu0 0.0
    %1170 = vmatpush2.msra.mxu0 0.0
    %1171 = vmatprep.subr.mxu0 0.0
    %1172 = vmatpush2.msra.mxu0 0.0
    %1173 = vmatprep.subr.mxu0 0.0
    %1174 = vmatpush2.msra.mxu0 0.0
    %1175 = vmatprep.subr.mxu0 0.0
    %1176 = vmatpush2.msra.mxu0 0.0
    %1177 = vmatprep.subr.mxu0 0.0
    %1178 = vmatpush2.msra.mxu0 0.0
    %1179 = vmatprep.subr.mxu0 0.0
    %1180 = vmatpush2.msra.mxu0 0.0
    %1181 = vmatprep.subr.mxu0 0.0
    %1182 = vmatpush2.msra.mxu0 0.0
    %1183 = vmatprep.mubr.f32.mxu0 0.0
    %1184 = vmatmul.mubr.f32.gmra.mxu0 %v1117
    %v1185 = vpop.f32.mrf.mxu0
    %v1186 = vadd.f32 %v1113, %v1185
    %v1187 = vpop.f32.mrf.mxu0
    %1188 = vdwg.mxu0
    %v1189 = vadd.f32 %v1186, %v150
    %v1190 = vxor.u32 %v1189, 2147483648
    %v1191 = vmul.f32 %v1190, 1.442695
    %v1192 = vpow.pop %v1191
    %v1193 = vadd.f32 %v1192, 1.0
    %v1194 = vrcp.pop %v1193
    %v1195 = vmul.f32 1.0, %v1194
    %v1196 = vtanh.pop %v1189
    %v1197 = vmul.f32 %v1195, %v1029
    %1199 = vrot.lane.b32.xlu0 %v1196, 64
    %v1200 = vpop.permute.xlu0 %1199
    %v1202 = vmul.f32 %v1195, %v1200
    %1204 = vrot.lane.b32.xlu0 %v1202, 32
    %v1205 = vpop.permute.xlu0 %1204
    %v1207 = vadd.f32 %v1197, %v1205
    %v1208 = vtanh.pop %v1207
    %1210 = vrot.lane.b32.xlu0 %v1208, 64
    %v1211 = vpop.permute.xlu0 %1210
    %v1213 = vmul.f32 %v1195, %v1211
    %v1214 = vrot.slane %v151, 5
    %1215 = vrot.lane.b32.xlu0 %v1214, 96
    %v1216 = vpop.permute.xlu0 %1215
    %v1218 = vmul.f32 %v1213, %v1216
    %1220 = vrot.lane.b32.xlu0 %v1218, 32
    %v1221 = vpop.permute.xlu0 %1220
    %v1222 = vsel %vm152, %v1221, 0
    %1224 = vmatprep.subr.mxu0 0.0
    %1225 = vmatpush1.msra.mxu0 0.0
    %1226 = vmatprep.subr.mxu0 0.0
    %1227 = vmatpush1.msra.mxu0 0.0
    %1228 = vmatprep.subr.mxu0 0.0
    %1229 = vmatpush1.msra.mxu0 0.0
    %1230 = vmatprep.subr.mxu0 0.0
    %1231 = vmatpush1.msra.mxu0 0.0
    %1232 = vmatprep.subr.mxu0 0.0
    %1233 = vmatpush1.msra.mxu0 0.0
    %1234 = vmatprep.subr.mxu0 0.0
    %1235 = vmatpush1.msra.mxu0 0.0
    %1236 = vmatprep.subr.mxu0 0.0
    %1237 = vmatpush1.msra.mxu0 0.0
    %1238 = vmatprep.subr.mxu0 0.0
    %1239 = vmatpush1.msra.mxu0 0.0
    %1240 = vmatprep.subr.mxu0 0.0
    %1241 = vmatpush1.msra.mxu0 0.0
    %1242 = vmatprep.subr.mxu0 0.0
    %1243 = vmatpush1.msra.mxu0 0.0
    %1244 = vmatprep.subr.mxu0 0.0
    %1245 = vmatpush1.msra.mxu0 0.0
    %1246 = vmatprep.subr.mxu0 0.0
    %1247 = vmatpush1.msra.mxu0 0.0
    %1248 = vmatprep.subr.mxu0 0.0
    %1249 = vmatpush1.msra.mxu0 %v147
    %1250 = vmatprep.subr.mxu0 0.0
    %1251 = vmatpush1.msra.mxu0 %v146
    %1252 = vmatprep.subr.mxu0 0.0
    %1253 = vmatpush1.msra.mxu0 %v145
    %1254 = vmatprep.subr.mxu0 0.0
    %1255 = vmatpush1.msra.mxu0 %v144
    %1256 = vmatprep.subr.mxu0 0.0
    %1257 = vmatpush2.msra.mxu0 0.0
    %1258 = vmatprep.subr.mxu0 0.0
    %1259 = vmatpush2.msra.mxu0 0.0
    %1260 = vmatprep.subr.mxu0 0.0
    %1261 = vmatpush2.msra.mxu0 0.0
    %1262 = vmatprep.subr.mxu0 0.0
    %1263 = vmatpush2.msra.mxu0 0.0
    %1264 = vmatprep.subr.mxu0 0.0
    %1265 = vmatpush2.msra.mxu0 0.0
    %1266 = vmatprep.subr.mxu0 0.0
    %1267 = vmatpush2.msra.mxu0 0.0
    %1268 = vmatprep.subr.mxu0 0.0
    %1269 = vmatpush2.msra.mxu0 0.0
    %1270 = vmatprep.subr.mxu0 0.0
    %1271 = vmatpush2.msra.mxu0 0.0
    %1272 = vmatprep.subr.mxu0 0.0
    %1273 = vmatpush2.msra.mxu0 0.0
    %1274 = vmatprep.subr.mxu0 0.0
    %1275 = vmatpush2.msra.mxu0 0.0
    %1276 = vmatprep.subr.mxu0 0.0
    %1277 = vmatpush2.msra.mxu0 0.0
    %1278 = vmatprep.subr.mxu0 0.0
    %1279 = vmatpush2.msra.mxu0 0.0
    %1280 = vmatprep.subr.mxu0 0.0
    %1281 = vmatpush2.msra.mxu0 0.0
    %1282 = vmatprep.subr.mxu0 0.0
    %1283 = vmatpush2.msra.mxu0 0.0
    %1284 = vmatprep.subr.mxu0 0.0
    %1285 = vmatpush2.msra.mxu0 0.0
    %1286 = vmatprep.subr.mxu0 0.0
    %1287 = vmatpush2.msra.mxu0 0.0
    %1288 = vmatprep.mubr.f32.mxu0 0.0
    %1289 = vmatmul.mubr.f32.gmra.mxu0 %v1222
    %v1290 = vpop.f32.mrf.mxu0
    %v1291 = vadd.f32 0.0, %v1290
    %v1292 = vpop.f32.mrf.mxu0
    %1293 = vdwg.mxu0
    %v1294 = vrot.slane %v137, 6
    %v1295 = vsel %vm152, %v1294, 0
    %1297 = vmatprep.subr.mxu0 0.0
    %1298 = vmatpush1.msra.mxu0 0.0
    %1299 = vmatprep.subr.mxu0 0.0
    %1300 = vmatpush1.msra.mxu0 0.0
    %1301 = vmatprep.subr.mxu0 0.0
    %1302 = vmatpush1.msra.mxu0 0.0
    %1303 = vmatprep.subr.mxu0 0.0
    %1304 = vmatpush1.msra.mxu0 0.0
    %1305 = vmatprep.subr.mxu0 0.0
    %1306 = vmatpush1.msra.mxu0 0.0
    %1307 = vmatprep.subr.mxu0 0.0
    %1308 = vmatpush1.msra.mxu0 0.0
    %1309 = vmatprep.subr.mxu0 0.0
    %1310 = vmatpush1.msra.mxu0 0.0
    %1311 = vmatprep.subr.mxu0 0.0
    %1312 = vmatpush1.msra.mxu0 0.0
    %1313 = vmatprep.subr.mxu0 0.0
    %1314 = vmatpush1.msra.mxu0 0.0
    %1315 = vmatprep.subr.mxu0 0.0
    %1316 = vmatpush1.msra.mxu0 0.0
    %1317 = vmatprep.subr.mxu0 0.0
    %1318 = vmatpush1.msra.mxu0 0.0
    %1319 = vmatprep.subr.mxu0 0.0
    %1320 = vmatpush1.msra.mxu0 0.0
    %1321 = vmatprep.subr.mxu0 0.0
    %1322 = vmatpush1.msra.mxu0 %v143
    %1323 = vmatprep.subr.mxu0 0.0
    %1324 = vmatpush1.msra.mxu0 %v142
    %1325 = vmatprep.subr.mxu0 0.0
    %1326 = vmatpush1.msra.mxu0 %v141
    %1327 = vmatprep.subr.mxu0 0.0
    %1328 = vmatpush1.msra.mxu0 %v140
    %1329 = vmatprep.subr.mxu0 0.0
    %1330 = vmatpush2.msra.mxu0 0.0
    %1331 = vmatprep.subr.mxu0 0.0
    %1332 = vmatpush2.msra.mxu0 0.0
    %1333 = vmatprep.subr.mxu0 0.0
    %1334 = vmatpush2.msra.mxu0 0.0
    %1335 = vmatprep.subr.mxu0 0.0
    %1336 = vmatpush2.msra.mxu0 0.0
    %1337 = vmatprep.subr.mxu0 0.0
    %1338 = vmatpush2.msra.mxu0 0.0
    %1339 = vmatprep.subr.mxu0 0.0
    %1340 = vmatpush2.msra.mxu0 0.0
    %1341 = vmatprep.subr.mxu0 0.0
    %1342 = vmatpush2.msra.mxu0 0.0
    %1343 = vmatprep.subr.mxu0 0.0
    %1344 = vmatpush2.msra.mxu0 0.0
    %1345 = vmatprep.subr.mxu0 0.0
    %1346 = vmatpush2.msra.mxu0 0.0
    %1347 = vmatprep.subr.mxu0 0.0
    %1348 = vmatpush2.msra.mxu0 0.0
    %1349 = vmatprep.subr.mxu0 0.0
    %1350 = vmatpush2.msra.mxu0 0.0
    %1351 = vmatprep.subr.mxu0 0.0
    %1352 = vmatpush2.msra.mxu0 0.0
    %1353 = vmatprep.subr.mxu0 0.0
    %1354 = vmatpush2.msra.mxu0 0.0
    %1355 = vmatprep.subr.mxu0 0.0
    %1356 = vmatpush2.msra.mxu0 0.0
    %1357 = vmatprep.subr.mxu0 0.0
    %1358 = vmatpush2.msra.mxu0 0.0
    %1359 = vmatprep.subr.mxu0 0.0
    %1360 = vmatpush2.msra.mxu0 0.0
    %1361 = vmatprep.mubr.f32.mxu0 0.0
    %1362 = vmatmul.mubr.f32.gmra.mxu0 %v1295
    %v1363 = vpop.f32.mrf.mxu0
    %v1364 = vadd.f32 %v1291, %v1363
    %v1365 = vpop.f32.mrf.mxu0
    %1366 = vdwg.mxu0
    %v1367 = vadd.f32 %v1364, %v150
    %v1368 = vxor.u32 %v1367, 2147483648
    %v1369 = vmul.f32 %v1368, 1.442695
    %v1370 = vpow.pop %v1369
    %v1371 = vadd.f32 %v1370, 1.0
    %v1372 = vrcp.pop %v1371
    %v1373 = vmul.f32 1.0, %v1372
    %v1374 = vtanh.pop %v1367
    %v1375 = vmul.f32 %v1373, %v1207
    %1377 = vrot.lane.b32.xlu0 %v1374, 64
    %v1378 = vpop.permute.xlu0 %1377
    %v1380 = vmul.f32 %v1373, %v1378
    %1382 = vrot.lane.b32.xlu0 %v1380, 32
    %v1383 = vpop.permute.xlu0 %1382
    %v1385 = vadd.f32 %v1375, %v1383
    %v1386 = vtanh.pop %v1385
    %1388 = vrot.lane.b32.xlu0 %v1386, 64
    %v1389 = vpop.permute.xlu0 %1388
    %v1391 = vmul.f32 %v1373, %v1389
    %v1392 = vrot.slane %v151, 6
    %1393 = vrot.lane.b32.xlu0 %v1392, 96
    %v1394 = vpop.permute.xlu0 %1393
    %v1396 = vmul.f32 %v1391, %v1394
    %1398 = vrot.lane.b32.xlu0 %v1396, 32
    %v1399 = vpop.permute.xlu0 %1398
    %v1400 = vsel %vm152, %v1399, 0
    %1402 = vmatprep.subr.mxu0 0.0
    %1403 = vmatpush1.msra.mxu0 0.0
    %1404 = vmatprep.subr.mxu0 0.0
    %1405 = vmatpush1.msra.mxu0 0.0
    %1406 = vmatprep.subr.mxu0 0.0
    %1407 = vmatpush1.msra.mxu0 0.0
    %1408 = vmatprep.subr.mxu0 0.0
    %1409 = vmatpush1.msra.mxu0 0.0
    %1410 = vmatprep.subr.mxu0 0.0
    %1411 = vmatpush1.msra.mxu0 0.0
    %1412 = vmatprep.subr.mxu0 0.0
    %1413 = vmatpush1.msra.mxu0 0.0
    %1414 = vmatprep.subr.mxu0 0.0
    %1415 = vmatpush1.msra.mxu0 0.0
    %1416 = vmatprep.subr.mxu0 0.0
    %1417 = vmatpush1.msra.mxu0 0.0
    %1418 = vmatprep.subr.mxu0 0.0
    %1419 = vmatpush1.msra.mxu0 0.0
    %1420 = vmatprep.subr.mxu0 0.0
    %1421 = vmatpush1.msra.mxu0 0.0
    %1422 = vmatprep.subr.mxu0 0.0
    %1423 = vmatpush1.msra.mxu0 0.0
    %1424 = vmatprep.subr.mxu0 0.0
    %1425 = vmatpush1.msra.mxu0 0.0
    %1426 = vmatprep.subr.mxu0 0.0
    %1427 = vmatpush1.msra.mxu0 %v147
    %1428 = vmatprep.subr.mxu0 0.0
    %1429 = vmatpush1.msra.mxu0 %v146
    %1430 = vmatprep.subr.mxu0 0.0
    %1431 = vmatpush1.msra.mxu0 %v145
    %1432 = vmatprep.subr.mxu0 0.0
    %1433 = vmatpush1.msra.mxu0 %v144
    %1434 = vmatprep.subr.mxu0 0.0
    %1435 = vmatpush2.msra.mxu0 0.0
    %1436 = vmatprep.subr.mxu0 0.0
    %1437 = vmatpush2.msra.mxu0 0.0
    %1438 = vmatprep.subr.mxu0 0.0
    %1439 = vmatpush2.msra.mxu0 0.0
    %1440 = vmatprep.subr.mxu0 0.0
    %1441 = vmatpush2.msra.mxu0 0.0
    %1442 = vmatprep.subr.mxu0 0.0
    %1443 = vmatpush2.msra.mxu0 0.0
    %1444 = vmatprep.subr.mxu0 0.0
    %1445 = vmatpush2.msra.mxu0 0.0
    %1446 = vmatprep.subr.mxu0 0.0
    %1447 = vmatpush2.msra.mxu0 0.0
    %1448 = vmatprep.subr.mxu0 0.0
    %1449 = vmatpush2.msra.mxu0 0.0
    %1450 = vmatprep.subr.mxu0 0.0
    %1451 = vmatpush2.msra.mxu0 0.0
    %1452 = vmatprep.subr.mxu0 0.0
    %1453 = vmatpush2.msra.mxu0 0.0
    %1454 = vmatprep.subr.mxu0 0.0
    %1455 = vmatpush2.msra.mxu0 0.0
    %1456 = vmatprep.subr.mxu0 0.0
    %1457 = vmatpush2.msra.mxu0 0.0
    %1458 = vmatprep.subr.mxu0 0.0
    %1459 = vmatpush2.msra.mxu0 0.0
    %1460 = vmatprep.subr.mxu0 0.0
    %1461 = vmatpush2.msra.mxu0 0.0
    %1462 = vmatprep.subr.mxu0 0.0
    %1463 = vmatpush2.msra.mxu0 0.0
    %1464 = vmatprep.subr.mxu0 0.0
    %1465 = vmatpush2.msra.mxu0 0.0
    %1466 = vmatprep.mubr.f32.mxu0 0.0
    %1467 = vmatmul.mubr.f32.gmra.mxu0 %v1400
    %v1468 = vpop.f32.mrf.mxu0
    %v1469 = vadd.f32 0.0, %v1468
    %v1470 = vpop.f32.mrf.mxu0
    %1471 = vdwg.mxu0
    %v1472 = vrot.slane %v137, 7
    %v1473 = vsel %vm152, %v1472, 0
    %1475 = vmatprep.subr.mxu0 0.0
    %1476 = vmatpush1.msra.mxu0 0.0
    %1477 = vmatprep.subr.mxu0 0.0
    %1478 = vmatpush1.msra.mxu0 0.0
    %1479 = vmatprep.subr.mxu0 0.0
    %1480 = vmatpush1.msra.mxu0 0.0
    %1481 = vmatprep.subr.mxu0 0.0
    %1482 = vmatpush1.msra.mxu0 0.0
    %1483 = vmatprep.subr.mxu0 0.0
    %1484 = vmatpush1.msra.mxu0 0.0
    %1485 = vmatprep.subr.mxu0 0.0
    %1486 = vmatpush1.msra.mxu0 0.0
    %1487 = vmatprep.subr.mxu0 0.0
    %1488 = vmatpush1.msra.mxu0 0.0
    %1489 = vmatprep.subr.mxu0 0.0
    %1490 = vmatpush1.msra.mxu0 0.0
    %1491 = vmatprep.subr.mxu0 0.0
    %1492 = vmatpush1.msra.mxu0 0.0
    %1493 = vmatprep.subr.mxu0 0.0
    %1494 = vmatpush1.msra.mxu0 0.0
    %1495 = vmatprep.subr.mxu0 0.0
    %1496 = vmatpush1.msra.mxu0 0.0
    %1497 = vmatprep.subr.mxu0 0.0
    %1498 = vmatpush1.msra.mxu0 0.0
    %1499 = vmatprep.subr.mxu0 0.0
    %1500 = vmatpush1.msra.mxu0 %v143
    %1501 = vmatprep.subr.mxu0 0.0
    %1502 = vmatpush1.msra.mxu0 %v142
    %1503 = vmatprep.subr.mxu0 0.0
    %1504 = vmatpush1.msra.mxu0 %v141
    %1505 = vmatprep.subr.mxu0 0.0
    %1506 = vmatpush1.msra.mxu0 %v140
    %1507 = vmatprep.subr.mxu0 0.0
    %1508 = vmatpush2.msra.mxu0 0.0
    %1509 = vmatprep.subr.mxu0 0.0
    %1510 = vmatpush2.msra.mxu0 0.0
    %1511 = vmatprep.subr.mxu0 0.0
    %1512 = vmatpush2.msra.mxu0 0.0
    %1513 = vmatprep.subr.mxu0 0.0
    %1514 = vmatpush2.msra.mxu0 0.0
    %1515 = vmatprep.subr.mxu0 0.0
    %1516 = vmatpush2.msra.mxu0 0.0
    %1517 = vmatprep.subr.mxu0 0.0
    %1518 = vmatpush2.msra.mxu0 0.0
    %1519 = vmatprep.subr.mxu0 0.0
    %1520 = vmatpush2.msra.mxu0 0.0
    %1521 = vmatprep.subr.mxu0 0.0
    %1522 = vmatpush2.msra.mxu0 0.0
    %1523 = vmatprep.subr.mxu0 0.0
    %1524 = vmatpush2.msra.mxu0 0.0
    %1525 = vmatprep.subr.mxu0 0.0
    %1526 = vmatpush2.msra.mxu0 0.0
    %1527 = vmatprep.subr.mxu0 0.0
    %1528 = vmatpush2.msra.mxu0 0.0
    %1529 = vmatprep.subr.mxu0 0.0
    %1530 = vmatpush2.msra.mxu0 0.0
    %1531 = vmatprep.subr.mxu0 0.0
    %1532 = vmatpush2.msra.mxu0 0.0
    %1533 = vmatprep.subr.mxu0 0.0
    %1534 = vmatpush2.msra.mxu0 0.0
    %1535 = vmatprep.subr.mxu0 0.0
    %1536 = vmatpush2.msra.mxu0 0.0
    %1537 = vmatprep.subr.mxu0 0.0
    %1538 = vmatpush2.msra.mxu0 0.0
    %1539 = vmatprep.mubr.f32.mxu0 0.0
    %1540 = vmatmul.mubr.f32.gmra.mxu0 %v1473
    %v1541 = vpop.f32.mrf.mxu0
    %v1542 = vadd.f32 %v1469, %v1541
    %v1543 = vpop.f32.mrf.mxu0
    %1544 = vdwg.mxu0
    %v1545 = vadd.f32 %v1542, %v150
    %v1546 = vxor.u32 %v1545, 2147483648
    %v1547 = vmul.f32 %v1546, 1.442695
    %v1548 = vpow.pop %v1547
    %v1549 = vadd.f32 %v1548, 1.0
    %v1550 = vrcp.pop %v1549
    %v1551 = vmul.f32 1.0, %v1550
    %v1552 = vtanh.pop %v1545
    %v1553 = vmul.f32 %v1551, %v1385
    %1555 = vrot.lane.b32.xlu0 %v1552, 64
    %v1556 = vpop.permute.xlu0 %1555
    %v1558 = vmul.f32 %v1551, %v1556
    %1560 = vrot.lane.b32.xlu0 %v1558, 32
    %v1561 = vpop.permute.xlu0 %1560
    %v1563 = vadd.f32 %v1553, %v1561
    %v1564 = vtanh.pop %v1563
    %1566 = vrot.lane.b32.xlu0 %v1564, 64
    %v1567 = vpop.permute.xlu0 %1566
    %v1569 = vmul.f32 %v1551, %v1567
    %v1570 = vrot.slane %v151, 7
    %1571 = vrot.lane.b32.xlu0 %v1570, 96
    %v1572 = vpop.permute.xlu0 %1571
    %v1574 = vmul.f32 %v1569, %v1572
    %v1575 = vrot.slane %v506, 7
    %v1577 = vrot.slane %v684, 6
    %v1579 = vrot.slane %v862, 5
    %v1581 = vrot.slane %v1040, 4
    %v1583 = vrot.slane %v1218, 3
    %v1585 = vrot.slane %v1396, 2
    %v1588 = vrot.slane %v1574, 1
    %vm1590 = vcmask 1040384
    %v1591 = vsel %vm1590, %v328, %v1575
    %vm1592 = vcmask 1041408
    %v1593 = vsel %vm1592, %v1591, %v1577
    %vm1594 = vcmask 1042432
    %v1595 = vsel %vm1594, %v1593, %v1579
    %vm1596 = vcmask 1043456
    %v1597 = vsel %vm1596, %v1595, %v1581
    %vm1598 = vcmask 1044480
    %v1599 = vsel %vm1598, %v1597, %v1583
    %vm1600 = vcmask 1045504
    %v1601 = vsel %vm1600, %v1599, %v1585
    %vm1602 = vcmask 1046528
    %v1603 = vsel %vm1602, %v1601, %v1588
    %v1604 = vld [vmem:[%s6] sm:$0xff]
    %v1605 = vld [vmem:[%s6 + $0x8] sm:$0xff]
    %v1606 = vld [vmem:[%s6 + $0x10] sm:$0xff]
    %v1607 = vld [vmem:[%s6 + $0x18] sm:$0xff]
    %v1608 = vld [vmem:[%s7] sm:$0x1]
    %v1610 = vlaneseq
    %v1611 = vshrl.u32 %v1610, 7
    %v1612 = vsub.s32 0, %v1611
    %v1613 = vrot.slane %v1608, %v1612
    %1616 = vrot.lane.b32.xlu0 %v1603, 32
    %v1617 = vpop.permute.xlu0 %1616
    %v1618 = vsel %vm152, %v1617, 0
    %1620 = vmatprep.subr.mxu0 0.0
    %1621 = vmatpush1.msra.mxu0 0.0
    %1622 = vmatprep.subr.mxu0 0.0
    %1623 = vmatpush1.msra.mxu0 0.0
    %1624 = vmatprep.subr.mxu0 0.0
    %1625 = vmatpush1.msra.mxu0 0.0
    %1626 = vmatprep.subr.mxu0 0.0
    %1627 = vmatpush1.msra.mxu0 0.0
    %1628 = vmatprep.subr.mxu0 0.0
    %1629 = vmatpush1.msra.mxu0 0.0
    %1630 = vmatprep.subr.mxu0 0.0
    %1631 = vmatpush1.msra.mxu0 0.0
    %1632 = vmatprep.subr.mxu0 0.0
    %1633 = vmatpush1.msra.mxu0 0.0
    %1634 = vmatprep.subr.mxu0 0.0
    %1635 = vmatpush1.msra.mxu0 0.0
    %1636 = vmatprep.subr.mxu0 0.0
    %1637 = vmatpush1.msra.mxu0 0.0
    %1638 = vmatprep.subr.mxu0 0.0
    %1639 = vmatpush1.msra.mxu0 0.0
    %1640 = vmatprep.subr.mxu0 0.0
    %1641 = vmatpush1.msra.mxu0 0.0
    %1642 = vmatprep.subr.mxu0 0.0
    %1643 = vmatpush1.msra.mxu0 0.0
    %1644 = vmatprep.subr.mxu0 0.0
    %1645 = vmatpush1.msra.mxu0 %v1607
    %1646 = vmatprep.subr.mxu0 0.0
    %1647 = vmatpush1.msra.mxu0 %v1606
    %1648 = vmatprep.subr.mxu0 0.0
    %1649 = vmatpush1.msra.mxu0 %v1605
    %1650 = vmatprep.subr.mxu0 0.0
    %1651 = vmatpush1.msra.mxu0 %v1604
    %1652 = vmatprep.subr.mxu0 0.0
    %1653 = vmatpush2.msra.mxu0 0.0
    %1654 = vmatprep.subr.mxu0 0.0
    %1655 = vmatpush2.msra.mxu0 0.0
    %1656 = vmatprep.subr.mxu0 0.0
    %1657 = vmatpush2.msra.mxu0 0.0
    %1658 = vmatprep.subr.mxu0 0.0
    %1659 = vmatpush2.msra.mxu0 0.0
    %1660 = vmatprep.subr.mxu0 0.0
    %1661 = vmatpush2.msra.mxu0 0.0
    %1662 = vmatprep.subr.mxu0 0.0
    %1663 = vmatpush2.msra.mxu0 0.0
    %1664 = vmatprep.subr.mxu0 0.0
    %1665 = vmatpush2.msra.mxu0 0.0
    %1666 = vmatprep.subr.mxu0 0.0
    %1667 = vmatpush2.msra.mxu0 0.0
    %1668 = vmatprep.subr.mxu0 0.0
    %1669 = vmatpush2.msra.mxu0 0.0
    %1670 = vmatprep.subr.mxu0 0.0
    %1671 = vmatpush2.msra.mxu0 0.0
    %1672 = vmatprep.subr.mxu0 0.0
    %1673 = vmatpush2.msra.mxu0 0.0
    %1674 = vmatprep.subr.mxu0 0.0
    %1675 = vmatpush2.msra.mxu0 0.0
    %1676 = vmatprep.subr.mxu0 0.0
    %1677 = vmatpush2.msra.mxu0 0.0
    %1678 = vmatprep.subr.mxu0 0.0
    %1679 = vmatpush2.msra.mxu0 0.0
    %1680 = vmatprep.subr.mxu0 0.0
    %1681 = vmatpush2.msra.mxu0 0.0
    %1682 = vmatprep.subr.mxu0 0.0
    %1683 = vmatpush2.msra.mxu0 0.0
    %1684 = vmatprep.mubr.f32.mxu0 0.0
    %1685 = vmatmul.mubr.f32.gmra.mxu0 %v1618
    %v1686 = vpop.f32.mrf.mxu0
    %v1687 = vadd.f32 %v1613, %v1686
    %v1688 = vpop.f32.mrf.mxu0
    %1689 = vdwg.mxu0
    %1690 = vst [vmem:[#allocation7] sm:$0xff] %v1687
    // Predicated region
    $region46: #{tpu_custom_call.1} parent=1 // pred_check
      _
    $region47: #{tpu_custom_call.1} parent=1 // pred_check_branch
      %1692 = sbr.rel (0) target = $region49
    $region48: #{tpu_custom_call.1} parent=1 // pred_region
      %s1694 = ssub.s32 128, 128
      %1695 = vsyncadd [#allocation4], %s1694
      %s1697 = sshll.u32 [#allocation7], 4
      %s1698 = int_to_ptr.vmem [resolvable:$true] %s1697
      %1700 = dma.vmem_to_hbm [thread:$0]  %s1698, 128, %s9, [#allocation4]
    $region49: #{tpu_custom_call.1} parent=1 // pred_fallthru
      _
    // Predicated region
    $region50: #{tpu_custom_call.1} parent=1 // pred_check
      _
    $region51: #{tpu_custom_call.1} parent=1 // pred_check_branch
      %1702 = sbr.rel (0) target = $region53
    $region52: #{tpu_custom_call.1} parent=1 // pred_region
      %1703 = dma.done [#allocation4], 128
    $region53: #{tpu_custom_call.1} parent=1 // pred_fallthru
      _
    %1704 = vsyncpa [#allocation3], 1
    %1705 = vsyncpa [#allocation6], 1
    %1706 = vsyncpa [#allocation4], 1

</llo_original>
